<compile_context>
chip_gen: v7x
topology: tpu7x:2x2x1
jax: 0.10.0
libtpu: 0.0.40
codegen_flags: <defaults>
</compile_context>

<pallas_src>
import functools

import jax
import jax.numpy as jnp
from jax import lax
from jax.experimental import pallas as pl
from jax.experimental.pallas import tpu as pltpu

BN_EPS = 1e-5


def _round_up(x, m):
    return ((x + m - 1) // m) * m


def _vmem_limit(block_bytes):
    # double-buffering + compiler-scratch margin, capped for v7x's 64 MiB VMEM.
    return int(min(max(4 * block_bytes + (4 << 20), 8 << 20), 48 << 20))


# ------------------------------ Pallas kernels -------------------------------

def _bn_stats_kernel(x_ref, out_ref):
    """Per-channel [sum(x), sum(x^2)], accumulated over the tile axis.

    One MXU contraction of ones(8, TM) against the lane-concatenated
    [x, x*x] tile (half the MXU pushes of two separate dots).  Output rows
    are identical; the wrapper reads row 0 of each core's (8, 2*Cin) slab.
    Grid = (2 cores 'parallel', tiles 'arbitrary'); the output block index
    depends only on the core, so each core accumulates VMEM-resident.
    Zero-padded tail rows are harmless (stats are linear in x and x^2).
    """
    @pl.when(pl.program_id(1) == 0)
    def _():
        out_ref[...] = jnp.zeros_like(out_ref)

    x = x_ref[...]                                      # (TM, Cin) f32
    xcat = jnp.concatenate([x, x * x], axis=-1)         # (TM, 2*Cin)
    ones = jnp.ones((8, xcat.shape[0]), jnp.float32)
    out_ref[...] += jnp.dot(ones, xcat, preferred_element_type=jnp.float32)


def _fused_deconv_kernel(x_ref, scale_ref, shift_ref, bias_ref, w_ref, o_ref,
                         *, kernel_size, stride):
    """BN-apply + ReLU + ConvTranspose2d (+bias) for one image, fully in VMEM.

    x_ref:     (1, H, W*Cin)            raw input rows (pixel-major lanes)
    scale_ref: (1, W*Cin)               BN scale, tiled over w
    shift_ref: (1, W*Cin)               BN shift, tiled over w
    bias_ref:  (1, OWc*Cout)            deconv bias, tiled over coarse-w
    w_ref:     (K, s, W*Cin, OWc*Cout)  banded weights: width overlap-add is
                                        pre-folded into the GEMM RHS
    o_ref:     (s*s, OHc, OWc*Cout)     residue-decomposed padded output:
               o[rh*s+rw, hc, wc*Cout+co] = y_padded[hc*s+rh, wc*s+rw, co]
    """
    K, s = kernel_size, stride
    H = x_ref.shape[1]

    # BN + ReLU prologue (pixels spread over sublanes+lanes -> dense VPU work).
    a = jnp.maximum(x_ref[0] * scale_ref[...] + shift_ref[...], 0.0)

    # Initialize the whole (padded) output block with the bias.
    o_ref[...] = jnp.broadcast_to(bias_ref[...], o_ref.shape)

    # One lane-dense GEMM per (kh, w-residue); the height overlap-add is a
    # cheap row-offset accumulate into the VMEM-resident output block.
    for kh in range(K):
        qh, rh = kh // s, kh % s
        for rw in range(s):
            g = jnp.dot(a, w_ref[kh, rw],
                        preferred_element_type=jnp.float32)    # (H, OWc*Cout)
            t = rh * s + rw
            o_ref[t, qh:qh + H, :] = o_ref[t, qh:qh + H, :] + g


# -------------------------------- JAX wrapper ---------------------------------

def deconv_forward(x_nchw, params, *, stride, padding, stats_tile_m=1024):
    """Equivalent of DeConv.forward: (N, Cin, H, W) -> (N, Cout, OH, OW)."""
    N, Cin, H, W = x_nchw.shape
    weight = params["w"].astype(jnp.float32)            # (Cin, Cout, K, K)
    bias = params["b"].astype(jnp.float32)              # (Cout,)
    gamma = params["bn_gamma"].astype(jnp.float32)      # (Cin,)
    beta = params["bn_beta"].astype(jnp.float32)        # (Cin,)
    Cout, K = weight.shape[1], weight.shape[2]
    s, p = stride, padding
    OH = (H - 1) * s - 2 * p + K
    OW = (W - 1) * s - 2 * p + K
    Kq = -(-K // s)                   # taps per output residue (ceil(K/s))
    OHc = H - 1 + Kq                  # coarse (residue-decomposed) extents
    OWc = W - 1 + Kq

    # Single input-sized transpose; both Pallas passes read views of it.
    x_nhwc = jnp.transpose(x_nchw, (0, 2, 3, 1)).astype(jnp.float32)

    # ---- pass 1: batch statistics (global over N*H*W, grid-accumulated) ----
    M = N * H * W
    x2d = x_nhwc.reshape(M, Cin)
    half = -(-M // 2)
    tm = min(stats_tile_m, _round_up(half, 8))
    nt = -(-half // tm)               # tiles per core
    Mp = 2 * nt * tm
    if Mp != M:
        x2d = jnp.pad(x2d, ((0, Mp - M), (0, 0)))   # zero rows: sums unaffected
    stats_vmem = _vmem_limit(4 * (tm * Cin + 16 * 2 * Cin))
    stats = pl.pallas_call(
        _bn_stats_kernel,
        out_shape=jax.ShapeDtypeStruct((2 * 8, 2 * Cin), jnp.float32),
        grid=(2, nt),
        in_specs=[pl.BlockSpec((tm, Cin), lambda c, i: (c * nt + i, 0))],
        out_specs=pl.BlockSpec((8, 2 * Cin), lambda c, i: (c, 0)),
        compiler_params=pltpu.CompilerParams(
            dimension_semantics=("parallel", "arbitrary"),
            vmem_limit_bytes=stats_vmem),
    )(x2d)
    tot = stats[0] + stats[8]         # reduce the two per-core partials
    mean = tot[:Cin] / M
    # TODO(synk): E[x^2]-mean^2 can cancel when |mean| >> std; fine at unit scale.
    var = tot[Cin:] / M - mean * mean              # biased (train-mode) variance
    scale = gamma * lax.rsqrt(var + BN_EPS)
    shift = beta - mean * scale

    # ---- banded deconv weights (tiny; built once per call) ----
    # B[kh, rw, w*Cin+ci, wc*Cout+co] = weight[ci, co, kh, (wc-w)*s+rw]
    #                                    for 0 <= wc - w < Kq, else 0.
    B6 = jnp.zeros((K, s, W, Cin, OWc, Cout), jnp.float32)
    for rw in range(s):
        for qw in range(Kq):
            kw = qw * s + rw
            if kw >= K:
                continue
            shift_eye = jnp.eye(W, OWc, k=qw, dtype=jnp.float32)   # (W, OWc)
            for kh in range(K):
                contrib = jnp.einsum('wv,io->wivo', shift_eye,
                                     weight[:, :, kh, kw])          # (W,Cin,OWc,Cout)
                B6 = B6.at[kh, rw].add(contrib)
    w_banded = B6.reshape(K, s, W * Cin, OWc * Cout)

    scale_row = jnp.tile(scale, W).reshape(1, W * Cin)
    shift_row = jnp.tile(shift, W).reshape(1, W * Cin)
    bias_row = jnp.tile(bias, OWc).reshape(1, OWc * Cout)
    x3 = x_nhwc.reshape(N, H, W * Cin)

    block_bytes = 4 * (H * W * Cin + 2 * W * Cin + OWc * Cout
                       + K * s * W * Cin * OWc * Cout
                       + s * s * OHc * OWc * Cout)
    fused_vmem = _vmem_limit(block_bytes)
    kern = functools.partial(_fused_deconv_kernel, kernel_size=K, stride=s)

    # ---- pass 2: fused BN + ReLU + deconv GEMM + col2im + bias ----
    o = pl.pallas_call(
        kern,
        out_shape=jax.ShapeDtypeStruct((N * s * s, OHc, OWc * Cout), jnp.float32),
        grid=(N,),
        in_specs=[
            pl.BlockSpec((1, H, W * Cin), lambda n: (n, 0, 0)),
            pl.BlockSpec((1, W * Cin), lambda n: (0, 0)),
            pl.BlockSpec((1, W * Cin), lambda n: (0, 0)),
            pl.BlockSpec((1, OWc * Cout), lambda n: (0, 0)),
            pl.BlockSpec((K, s, W * Cin, OWc * Cout), lambda n: (0, 0, 0, 0)),
        ],
        out_specs=pl.BlockSpec((s * s, OHc, OWc * Cout), lambda n: (n, 0, 0)),
        compiler_params=pltpu.CompilerParams(
            dimension_semantics=("parallel",),
            vmem_limit_bytes=fused_vmem),
    )(x3, scale_row, shift_row, bias_row, w_banded)

    # ---- epilogue: one output-sized transpose that de-interleaves residues
    # AND yields NCHW; then crop the transposed-conv padding. ----
    o = o.reshape(N, s, s, OHc, OWc, Cout)
    y_pad = jnp.transpose(o, (0, 5, 3, 1, 4, 2)).reshape(N, Cout, OHc * s, OWc * s)
    return y_pad[:, :, p:p + OH, p:p + OW]


# ----------------------------------- main -------------------------------------

if __name__ == "__main__":
    # DeConv(in=4, out=8, kernel=4, stride=2, padding=1)
    N, Cin, H, W = 2, 4, 16, 16
    Cout, K, STRIDE, PADDING = 8, 4, 2, 1

    key = jax.random.PRNGKey(0)
    kx, kg, kb, kw, kb2 = jax.random.split(key, 5)

    x = jax.random.normal(kx, (N, Cin, H, W), jnp.float32)
    params = {
        "bn_gamma": 1.0 + 0.1 * jax.random.normal(kg, (Cin,), jnp.float32),
        "bn_beta": 0.1 * jax.random.normal(kb, (Cin,), jnp.float32),
        "w": 0.1 * jax.random.normal(kw, (Cin, Cout, K, K), jnp.float32),
        "b": 0.1 * jax.random.normal(kb2, (Cout,), jnp.float32),
    }

    fwd = jax.jit(functools.partial(deconv_forward, stride=STRIDE, padding=PADDING))
    out = jax.block_until_ready(fwd(x, params))

    # ------- pure-JAX reference (BN train-mode -> ReLU -> ConvTranspose2d) -------
    xt = jnp.transpose(x, (0, 2, 3, 1))
    mean = jnp.mean(xt, axis=(0, 1, 2), keepdims=True)
    var = jnp.mean((xt - mean) ** 2, axis=(0, 1, 2), keepdims=True)
    act_ref = jnp.maximum(
        (xt - mean) / jnp.sqrt(var + BN_EPS) * params["bn_gamma"] + params["bn_beta"],
        0.0)
    wf_ref = jnp.transpose(params["w"][:, :, ::-1, ::-1], (2, 3, 0, 1))  # HWIO, flipped
    y_ref = lax.conv_general_dilated(
        act_ref, wf_ref, window_strides=(1, 1),
        padding=[(K - 1 - PADDING,) * 2, (K - 1 - PADDING,) * 2],
        lhs_dilation=(STRIDE, STRIDE),
        dimension_numbers=("NHWC", "HWIO", "NHWC")) + params["b"]
    y_ref = jnp.transpose(y_ref, (0, 3, 1, 2))

    expected_shape = (N, Cout, (H - 1) * STRIDE - 2 * PADDING + K,
                      (W - 1) * STRIDE - 2 * PADDING + K)
    assert out.shape == expected_shape, (out.shape, expected_shape)
    err = float(jnp.max(jnp.abs(out - y_ref)))
    assert err < 1e-4, f"mismatch vs reference: {err}"

    print("KERNEL_OK")
</pallas_src>

<mosaic_0001>
module attributes {stable_mosaic.version = 11 : i64} {
  func.func @_bn_stats_kernel(%arg0: i32, %arg1: i32, %arg2: memref<256x4xf32, #tpu.memory_space<vmem>>, %arg3: memref<8x8xf32, #tpu.memory_space<vmem>>) attributes {dimension_semantics = [#tpu.dimension_semantics<parallel>, #tpu.dimension_semantics<arbitrary>], iteration_bounds = array<i64: 2, 1>, scalar_prefetch = 0 : i64, scratch_operands = 0 : i64, tpu.core_type = #tpu.core_type<tc>, window_params = [{transform_indices = @transform_0, window_bounds = array<i64: 256, 4>}, {transform_indices = @transform_1, window_bounds = array<i64: 8, 8>}]} {
    %c0_i32 = arith.constant 0 : i32
    %0 = arith.cmpi eq, %arg1, %c0_i32 : i32
    %1 = arith.extui %0 : i1 to i32
    %c0_i32_0 = arith.constant 0 : i32
    %2 = arith.cmpi ne, %1, %c0_i32_0 : i32
    scf.if %2 {
      %cst_7 = arith.constant 0.000000e+00 : f32
      %11 = vector.broadcast %cst_7 : f32 to vector<8x8xf32>
      %c0_8 = arith.constant 0 : index
      %c0_9 = arith.constant 0 : index
      %12 = vector.load %arg3[%c0_8, %c0_9] : memref<8x8xf32, #tpu.memory_space<vmem>>, vector<8x8xf32>
      tpu.vector_store %arg3[%c0_8, %c0_9], %11 {strides = array<i32>} : memref<8x8xf32, #tpu.memory_space<vmem>>, vector<8x8xf32>,
    } else {
    }
    %c0 = arith.constant 0 : index
    %c0_1 = arith.constant 0 : index
    %3 = vector.load %arg2[%c0, %c0_1] : memref<256x4xf32, #tpu.memory_space<vmem>>, vector<256x4xf32>
    %4 = arith.mulf %3, %3 : vector<256x4xf32>
    %5 = tpu.concatenate %3, %4 in 1 : vector<256x4xf32>, vector<256x4xf32> -> vector<256x8xf32>
    %cst = arith.constant 1.000000e+00 : f32
    %6 = vector.broadcast %cst : f32 to vector<8x256xf32>
    %c0_2 = arith.constant 0 : index
    %c0_3 = arith.constant 0 : index
    %7 = vector.load %arg3[%c0_2, %c0_3] : memref<8x8xf32, #tpu.memory_space<vmem>>, vector<8x8xf32>
    %cst_4 = arith.constant dense<0.000000e+00> : vector<8x8xf32>
    %8 = tpu.matmul %6, %5, %cst_4 {dimension_numbers = #tpu.dot_dimension_numbers<[1], [0], [0], [1], [0, 0, 1, 1], [], []>} : vector<8x256xf32>, vector<256x8xf32>, vector<8x8xf32> -> vector<8x8xf32>
    %9 = arith.addf %7, %8 : vector<8x8xf32>
    %c0_5 = arith.constant 0 : index
    %c0_6 = arith.constant 0 : index
    %10 = vector.load %arg3[%c0_5, %c0_6] : memref<8x8xf32, #tpu.memory_space<vmem>>, vector<8x8xf32>
    tpu.vector_store %arg3[%c0_5, %c0_6], %9 {strides = array<i32>} : memref<8x8xf32, #tpu.memory_space<vmem>>, vector<8x8xf32>,
    return
  }
  func.func @transform_0(%arg0: i32, %arg1: i32) -> (i32, i32) {
    %c1_i32 = arith.constant 1 : i32
    %0 = arith.muli %arg0, %c1_i32 : i32
    %1 = arith.addi %0, %arg1 : i32
    %c0_i32 = arith.constant 0 : i32
    %c0_i32_0 = arith.constant 0 : i32
    return %1, %c0_i32 : i32, i32
  }
  func.func @transform_1(%arg0: i32, %arg1: i32) -> (i32, i32) {
    %c0_i32 = arith.constant 0 : i32
    %c0_i32_0 = arith.constant 0 : i32
    return %arg0, %c0_i32 : i32, i32
  }
}

module attributes {stable_mosaic.version = 11 : i64} {
  func.func @_fused_deconv_kernel(%arg0: i32, %arg1: memref<1x16x64xf32, #tpu.memory_space<vmem>>, %arg2: memref<1x64xf32, #tpu.memory_space<vmem>>, %arg3: memref<1x64xf32, #tpu.memory_space<vmem>>, %arg4: memref<1x136xf32, #tpu.memory_space<vmem>>, %arg5: memref<4x2x64x136xf32, #tpu.memory_space<vmem>>, %arg6: memref<4x17x136xf32, #tpu.memory_space<vmem>>) attributes {dimension_semantics = [#tpu.dimension_semantics<parallel>], iteration_bounds = array<i64: 2>, scalar_prefetch = 0 : i64, scratch_operands = 0 : i64, tpu.core_type = #tpu.core_type<tc>, window_params = [{transform_indices = @transform_0, window_bounds = array<i64: 1, 16, 64>}, {pipeline_mode = #tpu.pipeline_mode<synchronous>, transform_indices = @transform_1, window_bounds = array<i64: 1, 64>}, {pipeline_mode = #tpu.pipeline_mode<synchronous>, transform_indices = @transform_2, window_bounds = array<i64: 1, 64>}, {pipeline_mode = #tpu.pipeline_mode<synchronous>, transform_indices = @transform_3, window_bounds = array<i64: 1, 136>}, {pipeline_mode = #tpu.pipeline_mode<synchronous>, transform_indices = @transform_4, window_bounds = array<i64: 4, 2, 64, 136>}, {transform_indices = @transform_5, window_bounds = array<i64: 4, 17, 136>}]} {
    %c0 = arith.constant 0 : index
    %c0_0 = arith.constant 0 : index
    %c0_1 = arith.constant 0 : index
    %0 = vector.load %arg1[%c0, %c0_0, %c0_1] : memref<1x16x64xf32, #tpu.memory_space<vmem>>, vector<1x16x64xf32>
    %1 = vector.shape_cast %0 : vector<1x16x64xf32> to vector<16x64xf32>
    %c0_2 = arith.constant 0 : index
    %c0_3 = arith.constant 0 : index
    %2 = vector.load %arg2[%c0_2, %c0_3] : memref<1x64xf32, #tpu.memory_space<vmem>>, vector<1x64xf32>
    %3 = vector.broadcast %2 : vector<1x64xf32> to vector<16x64xf32>
    %4 = arith.mulf %1, %3 : vector<16x64xf32>
    %c0_4 = arith.constant 0 : index
    %c0_5 = arith.constant 0 : index
    %5 = vector.load %arg3[%c0_4, %c0_5] : memref<1x64xf32, #tpu.memory_space<vmem>>, vector<1x64xf32>
    %6 = vector.broadcast %5 : vector<1x64xf32> to vector<16x64xf32>
    %7 = arith.addf %4, %6 : vector<16x64xf32>
    %cst = arith.constant 0.000000e+00 : f32
    %8 = vector.broadcast %cst : f32 to vector<16x64xf32>
    %9 = arith.maximumf %7, %8 : vector<16x64xf32>
    %c0_6 = arith.constant 0 : index
    %c0_7 = arith.constant 0 : index
    %10 = vector.load %arg4[%c0_6, %c0_7] : memref<1x136xf32, #tpu.memory_space<vmem>>, vector<1x136xf32>
    %11 = vector.shape_cast %10 : vector<1x136xf32> to vector<1x1x136xf32>
    %12 = vector.broadcast %11 : vector<1x1x136xf32> to vector<4x17x136xf32>
    %c0_8 = arith.constant 0 : index
    %c0_9 = arith.constant 0 : index
    %c0_10 = arith.constant 0 : index
    %13 = vector.load %arg6[%c0_8, %c0_9, %c0_10] : memref<4x17x136xf32, #tpu.memory_space<vmem>>, vector<4x17x136xf32>
    tpu.vector_store %arg6[%c0_8, %c0_9, %c0_10], %12 {strides = array<i32>} : memref<4x17x136xf32, #tpu.memory_space<vmem>>, vector<4x17x136xf32>,
    %c0_11 = arith.constant 0 : index
    %c0_12 = arith.constant 0 : index
    %c0_13 = arith.constant 0 : index
    %c0_14 = arith.constant 0 : index
    %14 = vector.load %arg5[%c0_11, %c0_12, %c0_13, %c0_14] : memref<4x2x64x136xf32, #tpu.memory_space<vmem>>, vector<1x1x64x136xf32>
    %15 = vector.shape_cast %14 : vector<1x1x64x136xf32> to vector<64x136xf32>
    %cst_15 = arith.constant dense<0.000000e+00> : vector<16x136xf32>
    %16 = tpu.matmul %9, %15, %cst_15 {dimension_numbers = #tpu.dot_dimension_numbers<[1], [0], [0], [1], [0, 0, 1, 1], [], []>} : vector<16x64xf32>, vector<64x136xf32>, vector<16x136xf32> -> vector<16x136xf32>
    %c0_16 = arith.constant 0 : index
    %c0_17 = arith.constant 0 : index
    %c0_18 = arith.constant 0 : index
    %17 = vector.load %arg6[%c0_16, %c0_17, %c0_18] : memref<4x17x136xf32, #tpu.memory_space<vmem>>, vector<1x16x136xf32>
    %18 = vector.shape_cast %17 : vector<1x16x136xf32> to vector<16x136xf32>
    %19 = arith.addf %18, %16 : vector<16x136xf32>
    %c0_19 = arith.constant 0 : index
    %c0_20 = arith.constant 0 : index
    %c0_21 = arith.constant 0 : index
    %20 = vector.load %arg6[%c0_19, %c0_20, %c0_21] : memref<4x17x136xf32, #tpu.memory_space<vmem>>, vector<1x16x136xf32>
    %21 = vector.shape_cast %20 : vector<1x16x136xf32> to vector<16x136xf32>
    %22 = vector.shape_cast %19 : vector<16x136xf32> to vector<1x16x136xf32>
    tpu.vector_store %arg6[%c0_19, %c0_20, %c0_21], %22 {strides = array<i32>} : memref<4x17x136xf32, #tpu.memory_space<vmem>>, vector<1x16x136xf32>,
    %c0_22 = arith.constant 0 : index
    %c1 = arith.constant 1 : index
    %c0_23 = arith.constant 0 : index
    %c0_24 = arith.constant 0 : index
    %23 = vector.load %arg5[%c0_22, %c1, %c0_23, %c0_24] : memref<4x2x64x136xf32, #tpu.memory_space<vmem>>, vector<1x1x64x136xf32>
    %24 = vector.shape_cast %23 : vector<1x1x64x136xf32> to vector<64x136xf32>
    %cst_25 = arith.constant dense<0.000000e+00> : vector<16x136xf32>
    %25 = tpu.matmul %9, %24, %cst_25 {dimension_numbers = #tpu.dot_dimension_numbers<[1], [0], [0], [1], [0, 0, 1, 1], [], []>} : vector<16x64xf32>, vector<64x136xf32>, vector<16x136xf32> -> vector<16x136xf32>
    %c1_26 = arith.constant 1 : index
    %c0_27 = arith.constant 0 : index
    %c0_28 = arith.constant 0 : index
    %26 = vector.load %arg6[%c1_26, %c0_27, %c0_28] : memref<4x17x136xf32, #tpu.memory_space<vmem>>, vector<1x16x136xf32>
    %27 = vector.shape_cast %26 : vector<1x16x136xf32> to vector<16x136xf32>
    %28 = arith.addf %27, %25 : vector<16x136xf32>
    %c1_29 = arith.constant 1 : index
    %c0_30 = arith.constant 0 : index
    %c0_31 = arith.constant 0 : index
    %29 = vector.load %arg6[%c1_29, %c0_30, %c0_31] : memref<4x17x136xf32, #tpu.memory_space<vmem>>, vector<1x16x136xf32>
    %30 = vector.shape_cast %29 : vector<1x16x136xf32> to vector<16x136xf32>
    %31 = vector.shape_cast %28 : vector<16x136xf32> to vector<1x16x136xf32>
    tpu.vector_store %arg6[%c1_29, %c0_30, %c0_31], %31 {strides = array<i32>} : memref<4x17x136xf32, #tpu.memory_space<vmem>>, vector<1x16x136xf32>,
    %c1_32 = arith.constant 1 : index
    %c0_33 = arith.constant 0 : index
    %c0_34 = arith.constant 0 : index
    %c0_35 = arith.constant 0 : index
    %32 = vector.load %arg5[%c1_32, %c0_33, %c0_34, %c0_35] : memref<4x2x64x136xf32, #tpu.memory_space<vmem>>, vector<1x1x64x136xf32>
    %33 = vector.shape_cast %32 : vector<1x1x64x136xf32> to vector<64x136xf32>
    %cst_36 = arith.constant dense<0.000000e+00> : vector<16x136xf32>
    %34 = tpu.matmul %9, %33, %cst_36 {dimension_numbers = #tpu.dot_dimension_numbers<[1], [0], [0], [1], [0, 0, 1, 1], [], []>} : vector<16x64xf32>, vector<64x136xf32>, vector<16x136xf32> -> vector<16x136xf32>
    %c2 = arith.constant 2 : index
    %c0_37 = arith.constant 0 : index
    %c0_38 = arith.constant 0 : index
    %35 = vector.load %arg6[%c2, %c0_37, %c0_38] : memref<4x17x136xf32, #tpu.memory_space<vmem>>, vector<1x16x136xf32>
    %36 = vector.shape_cast %35 : vector<1x16x136xf32> to vector<16x136xf32>
    %37 = arith.addf %36, %34 : vector<16x136xf32>
    %c2_39 = arith.constant 2 : index
    %c0_40 = arith.constant 0 : index
    %c0_41 = arith.constant 0 : index
    %38 = vector.load %arg6[%c2_39, %c0_40, %c0_41] : memref<4x17x136xf32, #tpu.memory_space<vmem>>, vector<1x16x136xf32>
    %39 = vector.shape_cast %38 : vector<1x16x136xf32> to vector<16x136xf32>
    %40 = vector.shape_cast %37 : vector<16x136xf32> to vector<1x16x136xf32>
    tpu.vector_store %arg6[%c2_39, %c0_40, %c0_41], %40 {strides = array<i32>} : memref<4x17x136xf32, #tpu.memory_space<vmem>>, vector<1x16x136xf32>,
    %c1_42 = arith.constant 1 : index
    %c1_43 = arith.constant 1 : index
    %c0_44 = arith.constant 0 : index
    %c0_45 = arith.constant 0 : index
    %41 = vector.load %arg5[%c1_42, %c1_43, %c0_44, %c0_45] : memref<4x2x64x136xf32, #tpu.memory_space<vmem>>, vector<1x1x64x136xf32>
    %42 = vector.shape_cast %41 : vector<1x1x64x136xf32> to vector<64x136xf32>
    %cst_46 = arith.constant dense<0.000000e+00> : vector<16x136xf32>
    %43 = tpu.matmul %9, %42, %cst_46 {dimension_numbers = #tpu.dot_dimension_numbers<[1], [0], [0], [1], [0, 0, 1, 1], [], []>} : vector<16x64xf32>, vector<64x136xf32>, vector<16x136xf32> -> vector<16x136xf32>
    %c3 = arith.constant 3 : index
    %c0_47 = arith.constant 0 : index
    %c0_48 = arith.constant 0 : index
    %44 = vector.load %arg6[%c3, %c0_47, %c0_48] : memref<4x17x136xf32, #tpu.memory_space<vmem>>, vector<1x16x136xf32>
    %45 = vector.shape_cast %44 : vector<1x16x136xf32> to vector<16x136xf32>
    %46 = arith.addf %45, %43 : vector<16x136xf32>
    %c3_49 = arith.constant 3 : index
    %c0_50 = arith.constant 0 : index
    %c0_51 = arith.constant 0 : index
    %47 = vector.load %arg6[%c3_49, %c0_50, %c0_51] : memref<4x17x136xf32, #tpu.memory_space<vmem>>, vector<1x16x136xf32>
    %48 = vector.shape_cast %47 : vector<1x16x136xf32> to vector<16x136xf32>
    %49 = vector.shape_cast %46 : vector<16x136xf32> to vector<1x16x136xf32>
    tpu.vector_store %arg6[%c3_49, %c0_50, %c0_51], %49 {strides = array<i32>} : memref<4x17x136xf32, #tpu.memory_space<vmem>>, vector<1x16x136xf32>,
    %c2_52 = arith.constant 2 : index
    %c0_53 = arith.constant 0 : index
    %c0_54 = arith.constant 0 : index
    %c0_55 = arith.constant 0 : index
    %50 = vector.load %arg5[%c2_52, %c0_53, %c0_54, %c0_55] : memref<4x2x64x136xf32, #tpu.memory_space<vmem>>, vector<1x1x64x136xf32>
    %51 = vector.shape_cast %50 : vector<1x1x64x136xf32> to vector<64x136xf32>
    %cst_56 = arith.constant dense<0.000000e+00> : vector<16x136xf32>
    %52 = tpu.matmul %9, %51, %cst_56 {dimension_numbers = #tpu.dot_dimension_numbers<[1], [0], [0], [1], [0, 0, 1, 1], [], []>} : vector<16x64xf32>, vector<64x136xf32>, vector<16x136xf32> -> vector<16x136xf32>
    %c0_57 = arith.constant 0 : index
    %c1_58 = arith.constant 1 : index
    %c0_59 = arith.constant 0 : index
    %53 = vector.load %arg6[%c0_57, %c1_58, %c0_59] : memref<4x17x136xf32, #tpu.memory_space<vmem>>, vector<1x16x136xf32>
    %54 = vector.shape_cast %53 : vector<1x16x136xf32> to vector<16x136xf32>
    %55 = arith.addf %54, %52 : vector<16x136xf32>
    %c0_60 = arith.constant 0 : index
    %c1_61 = arith.constant 1 : index
    %c0_62 = arith.constant 0 : index
    %56 = vector.load %arg6[%c0_60, %c1_61, %c0_62] : memref<4x17x136xf32, #tpu.memory_space<vmem>>, vector<1x16x136xf32>
    %57 = vector.shape_cast %56 : vector<1x16x136xf32> to vector<16x136xf32>
    %58 = vector.shape_cast %55 : vector<16x136xf32> to vector<1x16x136xf32>
    tpu.vector_store %arg6[%c0_60, %c1_61, %c0_62], %58 {strides = array<i32>} : memref<4x17x136xf32, #tpu.memory_space<vmem>>, vector<1x16x136xf32>,
    %c2_63 = arith.constant 2 : index
    %c1_64 = arith.constant 1 : index
    %c0_65 = arith.constant 0 : index
    %c0_66 = arith.constant 0 : index
    %59 = vector.load %arg5[%c2_63, %c1_64, %c0_65, %c0_66] : memref<4x2x64x136xf32, #tpu.memory_space<vmem>>, vector<1x1x64x136xf32>
    %60 = vector.shape_cast %59 : vector<1x1x64x136xf32> to vector<64x136xf32>
    %cst_67 = arith.constant dense<0.000000e+00> : vector<16x136xf32>
    %61 = tpu.matmul %9, %60, %cst_67 {dimension_numbers = #tpu.dot_dimension_numbers<[1], [0], [0], [1], [0, 0, 1, 1], [], []>} : vector<16x64xf32>, vector<64x136xf32>, vector<16x136xf32> -> vector<16x136xf32>
    %c1_68 = arith.constant 1 : index
    %c1_69 = arith.constant 1 : index
    %c0_70 = arith.constant 0 : index
    %62 = vector.load %arg6[%c1_68, %c1_69, %c0_70] : memref<4x17x136xf32, #tpu.memory_space<vmem>>, vector<1x16x136xf32>
    %63 = vector.shape_cast %62 : vector<1x16x136xf32> to vector<16x136xf32>
    %64 = arith.addf %63, %61 : vector<16x136xf32>
    %c1_71 = arith.constant 1 : index
    %c1_72 = arith.constant 1 : index
    %c0_73 = arith.constant 0 : index
    %65 = vector.load %arg6[%c1_71, %c1_72, %c0_73] : memref<4x17x136xf32, #tpu.memory_space<vmem>>, vector<1x16x136xf32>
    %66 = vector.shape_cast %65 : vector<1x16x136xf32> to vector<16x136xf32>
    %67 = vector.shape_cast %64 : vector<16x136xf32> to vector<1x16x136xf32>
    tpu.vector_store %arg6[%c1_71, %c1_72, %c0_73], %67 {strides = array<i32>} : memref<4x17x136xf32, #tpu.memory_space<vmem>>, vector<1x16x136xf32>,
    %c3_74 = arith.constant 3 : index
    %c0_75 = arith.constant 0 : index
    %c0_76 = arith.constant 0 : index
    %c0_77 = arith.constant 0 : index
    %68 = vector.load %arg5[%c3_74, %c0_75, %c0_76, %c0_77] : memref<4x2x64x136xf32, #tpu.memory_space<vmem>>, vector<1x1x64x136xf32>
    %69 = vector.shape_cast %68 : vector<1x1x64x136xf32> to vector<64x136xf32>
    %cst_78 = arith.constant dense<0.000000e+00> : vector<16x136xf32>
    %70 = tpu.matmul %9, %69, %cst_78 {dimension_numbers = #tpu.dot_dimension_numbers<[1], [0], [0], [1], [0, 0, 1, 1], [], []>} : vector<16x64xf32>, vector<64x136xf32>, vector<16x136xf32> -> vector<16x136xf32>
    %c2_79 = arith.constant 2 : index
    %c1_80 = arith.constant 1 : index
    %c0_81 = arith.constant 0 : index
    %71 = vector.load %arg6[%c2_79, %c1_80, %c0_81] : memref<4x17x136xf32, #tpu.memory_space<vmem>>, vector<1x16x136xf32>
    %72 = vector.shape_cast %71 : vector<1x16x136xf32> to vector<16x136xf32>
    %73 = arith.addf %72, %70 : vector<16x136xf32>
    %c2_82 = arith.constant 2 : index
    %c1_83 = arith.constant 1 : index
    %c0_84 = arith.constant 0 : index
    %74 = vector.load %arg6[%c2_82, %c1_83, %c0_84] : memref<4x17x136xf32, #tpu.memory_space<vmem>>, vector<1x16x136xf32>
    %75 = vector.shape_cast %74 : vector<1x16x136xf32> to vector<16x136xf32>
    %76 = vector.shape_cast %73 : vector<16x136xf32> to vector<1x16x136xf32>
    tpu.vector_store %arg6[%c2_82, %c1_83, %c0_84], %76 {strides = array<i32>} : memref<4x17x136xf32, #tpu.memory_space<vmem>>, vector<1x16x136xf32>,
    %c3_85 = arith.constant 3 : index
    %c1_86 = arith.constant 1 : index
    %c0_87 = arith.constant 0 : index
    %c0_88 = arith.constant 0 : index
    %77 = vector.load %arg5[%c3_85, %c1_86, %c0_87, %c0_88] : memref<4x2x64x136xf32, #tpu.memory_space<vmem>>, vector<1x1x64x136xf32>
    %78 = vector.shape_cast %77 : vector<1x1x64x136xf32> to vector<64x136xf32>
    %cst_89 = arith.constant dense<0.000000e+00> : vector<16x136xf32>
    %79 = tpu.matmul %9, %78, %cst_89 {dimension_numbers = #tpu.dot_dimension_numbers<[1], [0], [0], [1], [0, 0, 1, 1], [], []>} : vector<16x64xf32>, vector<64x136xf32>, vector<16x136xf32> -> vector<16x136xf32>
    %c3_90 = arith.constant 3 : index
    %c1_91 = arith.constant 1 : index
    %c0_92 = arith.constant 0 : index
    %80 = vector.load %arg6[%c3_90, %c1_91, %c0_92] : memref<4x17x136xf32, #tpu.memory_space<vmem>>, vector<1x16x136xf32>
    %81 = vector.shape_cast %80 : vector<1x16x136xf32> to vector<16x136xf32>
    %82 = arith.addf %81, %79 : vector<16x136xf32>
    %c3_93 = arith.constant 3 : index
    %c1_94 = arith.constant 1 : index
    %c0_95 = arith.constant 0 : index
    %83 = vector.load %arg6[%c3_93, %c1_94, %c0_95] : memref<4x17x136xf32, #tpu.memory_space<vmem>>, vector<1x16x136xf32>
    %84 = vector.shape_cast %83 : vector<1x16x136xf32> to vector<16x136xf32>
    %85 = vector.shape_cast %82 : vector<16x136xf32> to vector<1x16x136xf32>
    tpu.vector_store %arg6[%c3_93, %c1_94, %c0_95], %85 {strides = array<i32>} : memref<4x17x136xf32, #tpu.memory_space<vmem>>, vector<1x16x136xf32>,
    return
  }
  func.func @transform_0(%arg0: i32) -> (i32, i32, i32) {
    %c0_i32 = arith.constant 0 : i32
    %c0_i32_0 = arith.constant 0 : i32
    %c0_i32_1 = arith.constant 0 : i32
    return %arg0, %c0_i32, %c0_i32_0 : i32, i32, i32
  }
  func.func @transform_1(%arg0: i32) -> (i32, i32) {
    %c0_i32 = arith.constant 0 : i32
    %c0_i32_0 = arith.constant 0 : i32
    %c0_i32_1 = arith.constant 0 : i32
    return %c0_i32, %c0_i32_0 : i32, i32
  }
  func.func @transform_2(%arg0: i32) -> (i32, i32) {
    %c0_i32 = arith.constant 0 : i32
    %c0_i32_0 = arith.constant 0 : i32
    %c0_i32_1 = arith.constant 0 : i32
    return %c0_i32, %c0_i32_0 : i32, i32
  }
  func.func @transform_3(%arg0: i32) -> (i32, i32) {
    %c0_i32 = arith.constant 0 : i32
    %c0_i32_0 = arith.constant 0 : i32
    %c0_i32_1 = arith.constant 0 : i32
    return %c0_i32, %c0_i32_0 : i32, i32
  }
  func.func @transform_4(%arg0: i32) -> (i32, i32, i32, i32) {
    %c0_i32 = arith.constant 0 : i32
    %c0_i32_0 = arith.constant 0 : i32
    %c0_i32_1 = arith.constant 0 : i32
    %c0_i32_2 = arith.constant 0 : i32
    %c0_i32_3 = arith.constant 0 : i32
    return %c0_i32, %c0_i32_0, %c0_i32_1, %c0_i32_2 : i32, i32, i32, i32
  }
  func.func @transform_5(%arg0: i32) -> (i32, i32, i32) {
    %c0_i32 = arith.constant 0 : i32
    %c0_i32_0 = arith.constant 0 : i32
    %c0_i32_1 = arith.constant 0 : i32
    return %arg0, %c0_i32, %c0_i32_0 : i32, i32, i32
  }
}

</mosaic_0001>

<llo_original>
// kernel: tile.18
$region0: #{tile.18}
  #allocation0 [shape = 's32[1]{0}', space=sflag, size = 0x4, scoped, tag = 'scoped memory for tile.18']
  %s0 = inlined_call_operand.vmem [shape: f32[4], index: 0, kind: input, shape index: {}]
  %s1 = inlined_call_operand.vmem [shape: f32[16,4], index: 1, kind: output, shape index: {}]
  // Predicated region
  $region2: #{tile.18} parent=0 // pred_check
    _
  $region3: #{tile.18} parent=0 // pred_check_branch
    %3 = sbr.rel (0) target = $region5
  $region4: #{tile.18} parent=0 // pred_region
    _
  $region5: #{tile.18} parent=0 // pred_fallthru
    _
  %v4 = vld [vmem:[%s0] ss:$0 sm:$0xff]
  %5 = vst [vmem:[%s1] sm:$0xff] %v4
  %s6 = scalar_lea.vmem %s1, 8
  %7 = vst [vmem:[%s6] sm:$0xff] %v4

// kernel: tile.19
$region0: #{tile.19}
  %s0 = inlined_call_operand.vmem [shape: f32[16,4], index: 0, kind: input, shape index: {}]
  %s1 = inlined_call_operand.vmem [shape: f32[1,64], index: 1, kind: output, shape index: {}]
  $region1: #{tile.19} parent=0
    #allocation0 [shape = 'u8[4096]{0}', space=vmem, size = 0x1000, scoped, tag = 'scoped mem for output reshape']
    %v2 = vld [vmem:[%s0] sm:$0x1]
    %vm3 = vcmask 31744
    %4 = vst.msk [vmem:[#allocation0] sm:$0x1] %vm3, %v2
    %s5 = scalar_lea.vmem %s0, 15
    %v6 = vld [vmem:[%s5] sm:$0x1]
    %7 = vrot.lane.b32.xlu0 %v6, 60
    %v8 = vpop.permute.xlu0 %7
    %vm9 = vcmask 523744
    %10 = vst.msk [vmem:[#allocation0] sm:$0x1] %vm9, %v8
    %s11 = scalar_lea.vmem %s0, 14
    %v12 = vld [vmem:[%s11] sm:$0x1]
    %13 = vrot.lane.b32.xlu0 %v12, 56
    %v14 = vpop.permute.xlu0 %13
    %vm15 = vcmask 490944
    %16 = vst.msk [vmem:[#allocation0] sm:$0x1] %vm15, %v14
    %s17 = scalar_lea.vmem %s0, 13
    %v18 = vld [vmem:[%s17] sm:$0x1]
    %19 = vrot.lane.b32.xlu0 %v18, 52
    %v20 = vpop.permute.xlu0 %19
    %vm21 = vcmask 458144
    %22 = vst.msk [vmem:[#allocation0] sm:$0x1] %vm21, %v20
    %s23 = scalar_lea.vmem %s0, 12
    %v24 = vld [vmem:[%s23] sm:$0x1]
    %25 = vrot.lane.b32.xlu0 %v24, 48
    %v26 = vpop.permute.xlu0 %25
    %vm27 = vcmask 425344
    %28 = vst.msk [vmem:[#allocation0] sm:$0x1] %vm27, %v26
    %s29 = scalar_lea.vmem %s0, 11
    %v30 = vld [vmem:[%s29] sm:$0x1]
    %31 = vrot.lane.b32.xlu0 %v30, 44
    %v32 = vpop.permute.xlu0 %31
    %vm33 = vcmask 392544
    %34 = vst.msk [vmem:[#allocation0] sm:$0x1] %vm33, %v32
    %s35 = scalar_lea.vmem %s0, 10
    %v36 = vld [vmem:[%s35] sm:$0x1]
    %37 = vrot.lane.b32.xlu0 %v36, 40
    %v38 = vpop.permute.xlu0 %37
    %vm39 = vcmask 359744
    %40 = vst.msk [vmem:[#allocation0] sm:$0x1] %vm39, %v38
    %s41 = scalar_lea.vmem %s0, 9
    %v42 = vld [vmem:[%s41] sm:$0x1]
    %43 = vrot.lane.b32.xlu0 %v42, 36
    %v44 = vpop.permute.xlu0 %43
    %vm45 = vcmask 326944
    %46 = vst.msk [vmem:[#allocation0] sm:$0x1] %vm45, %v44
    %s47 = scalar_lea.vmem %s0, 8
    %v48 = vld [vmem:[%s47] sm:$0x1]
    %49 = vrot.lane.b32.xlu0 %v48, 32
    %v50 = vpop.permute.xlu0 %49
    %vm51 = vcmask 294144
    %52 = vst.msk [vmem:[#allocation0] sm:$0x1] %vm51, %v50
    %s53 = scalar_lea.vmem %s0, 7
    %v54 = vld [vmem:[%s53] sm:$0x1]
    %55 = vrot.lane.b32.xlu0 %v54, 28
    %v56 = vpop.permute.xlu0 %55
    %vm57 = vcmask 261344
    %58 = vst.msk [vmem:[#allocation0] sm:$0x1] %vm57, %v56
    %s59 = scalar_lea.vmem %s0, 6
    %v60 = vld [vmem:[%s59] sm:$0x1]
    %61 = vrot.lane.b32.xlu0 %v60, 24
    %v62 = vpop.permute.xlu0 %61
    %vm63 = vcmask 228544
    %64 = vst.msk [vmem:[#allocation0] sm:$0x1] %vm63, %v62
    %s65 = scalar_lea.vmem %s0, 5
    %v66 = vld [vmem:[%s65] sm:$0x1]
    %67 = vrot.lane.b32.xlu0 %v66, 20
    %v68 = vpop.permute.xlu0 %67
    %vm69 = vcmask 195744
    %70 = vst.msk [vmem:[#allocation0] sm:$0x1] %vm69, %v68
    %s71 = scalar_lea.vmem %s0, 4
    %v72 = vld [vmem:[%s71] sm:$0x1]
    %73 = vrot.lane.b32.xlu0 %v72, 16
    %v74 = vpop.permute.xlu0 %73
    %vm75 = vcmask 162944
    %76 = vst.msk [vmem:[#allocation0] sm:$0x1] %vm75, %v74
    %s77 = scalar_lea.vmem %s0, 3
    %v78 = vld [vmem:[%s77] sm:$0x1]
    %79 = vrot.lane.b32.xlu0 %v78, 12
    %v80 = vpop.permute.xlu0 %79
    %vm81 = vcmask 130144
    %82 = vst.msk [vmem:[#allocation0] sm:$0x1] %vm81, %v80
    %s83 = scalar_lea.vmem %s0, 2
    %v84 = vld [vmem:[%s83] sm:$0x1]
    %85 = vrot.lane.b32.xlu0 %v84, 8
    %v86 = vpop.permute.xlu0 %85
    %vm87 = vcmask 97344
    %88 = vst.msk [vmem:[#allocation0] sm:$0x1] %vm87, %v86
    %s89 = scalar_lea.vmem %s0, 1
    %v90 = vld [vmem:[%s89] sm:$0x1]
    %91 = vrot.lane.b32.xlu0 %v90, 4
    %v92 = vpop.permute.xlu0 %91
    %vm93 = vcmask 64544
    %94 = vst.msk [vmem:[#allocation0] sm:$0x1] %vm93, %v92
    %s96 = sshllo.u32 0, 1
    %v98 = vld [vmem:[#allocation0] sm:%s96]
    %s99 = sshllo.u32 0, 1
    %100 = vst [vmem:[%s1] sm:%s99] %v98

// kernel: tile.28
$region0: #{tile.28}
  #allocation0 [shape = 's32[1]{0}', space=sflag, size = 0x4, scoped, tag = 'scoped memory for tile.28']
  %s0 = inlined_call_operand.vmem [shape: f32[8], index: 0, kind: input, shape index: {}]
  %s1 = inlined_call_operand.vmem [shape: f32[17,8], index: 1, kind: output, shape index: {}]
  // Predicated region
  $region2: #{tile.28} parent=0 // pred_check
    _
  $region3: #{tile.28} parent=0 // pred_check_branch
    %3 = sbr.rel (0) target = $region5
  $region4: #{tile.28} parent=0 // pred_region
    _
  $region5: #{tile.28} parent=0 // pred_fallthru
    _
  %v4 = vld [vmem:[%s0] ss:$0 sm:$0xff]
  %5 = vst [vmem:[%s1] sm:$0xff] %v4
  %s6 = scalar_lea.vmem %s1, 8
  %7 = vst [vmem:[%s6] sm:$0xff] %v4
  %s8 = scalar_lea.vmem %s1, 16
  %9 = vst [vmem:[%s8] sm:$0xff] %v4

// kernel: tile.29
$region0: #{tile.29}
  %s0 = inlined_call_operand.vmem [shape: f32[17,8], index: 0, kind: input, shape index: {}]
  %s1 = inlined_call_operand.vmem [shape: f32[1,136], index: 1, kind: output, shape index: {}]
  $region1: #{tile.29} parent=0
    #allocation0 [shape = 'u8[8192]{0}', space=vmem, size = 0x2000, scoped, tag = 'scoped mem for output reshape']
    %s2 = smov 3
    %v3 = vld [vmem:[%s0] ss:$16 sm:%s2]
    %vm4 = vcmask 64512
    %5 = vst.msk [vmem:[#allocation0] ss:$8 sm:$0x3] %vm4, %v3
    %s6 = scalar_lea.vmem %s0, 15
    %v7 = vld [vmem:[%s6] sm:$0x1]
    %8 = vrot.lane.b32.xlu0 %v7, 120
    %v9 = vpop.permute.xlu0 %8
    %vm10 = vcmask 1048512
    %11 = vst.msk [vmem:[#allocation0] sm:$0x1] %vm10, %v9
    %s12 = scalar_lea.vmem %s0, 14
    %v13 = vld [vmem:[%s12] sm:$0x1]
    %14 = vrot.lane.b32.xlu0 %v13, 112
    %v15 = vpop.permute.xlu0 %14
    %vm16 = vcmask 982912
    %17 = vst.msk [vmem:[#allocation0] sm:$0x1] %vm16, %v15
    %s18 = scalar_lea.vmem %s0, 13
    %v19 = vld [vmem:[%s18] sm:$0x1]
    %20 = vrot.lane.b32.xlu0 %v19, 104
    %v21 = vpop.permute.xlu0 %20
    %vm22 = vcmask 917312
    %23 = vst.msk [vmem:[#allocation0] sm:$0x1] %vm22, %v21
    %s24 = scalar_lea.vmem %s0, 12
    %v25 = vld [vmem:[%s24] sm:$0x1]
    %26 = vrot.lane.b32.xlu0 %v25, 96
    %v27 = vpop.permute.xlu0 %26
    %vm28 = vcmask 851712
    %29 = vst.msk [vmem:[#allocation0] sm:$0x1] %vm28, %v27
    %s30 = scalar_lea.vmem %s0, 11
    %v31 = vld [vmem:[%s30] sm:$0x1]
    %32 = vrot.lane.b32.xlu0 %v31, 88
    %v33 = vpop.permute.xlu0 %32
    %vm34 = vcmask 786112
    %35 = vst.msk [vmem:[#allocation0] sm:$0x1] %vm34, %v33
    %s36 = scalar_lea.vmem %s0, 10
    %v37 = vld [vmem:[%s36] sm:$0x1]
    %38 = vrot.lane.b32.xlu0 %v37, 80
    %v39 = vpop.permute.xlu0 %38
    %vm40 = vcmask 720512
    %41 = vst.msk [vmem:[#allocation0] sm:$0x1] %vm40, %v39
    %s42 = scalar_lea.vmem %s0, 9
    %v43 = vld [vmem:[%s42] sm:$0x1]
    %44 = vrot.lane.b32.xlu0 %v43, 72
    %v45 = vpop.permute.xlu0 %44
    %vm46 = vcmask 654912
    %47 = vst.msk [vmem:[#allocation0] sm:$0x1] %vm46, %v45
    %s48 = scalar_lea.vmem %s0, 8
    %v49 = vld [vmem:[%s48] sm:$0x1]
    %50 = vrot.lane.b32.xlu0 %v49, 64
    %v51 = vpop.permute.xlu0 %50
    %vm52 = vcmask 589312
    %53 = vst.msk [vmem:[#allocation0] sm:$0x1] %vm52, %v51
    %s54 = scalar_lea.vmem %s0, 7
    %v55 = vld [vmem:[%s54] sm:$0x1]
    %56 = vrot.lane.b32.xlu0 %v55, 56
    %v57 = vpop.permute.xlu0 %56
    %vm58 = vcmask 523712
    %59 = vst.msk [vmem:[#allocation0] sm:$0x1] %vm58, %v57
    %s60 = scalar_lea.vmem %s0, 6
    %v61 = vld [vmem:[%s60] sm:$0x1]
    %62 = vrot.lane.b32.xlu0 %v61, 48
    %v63 = vpop.permute.xlu0 %62
    %vm64 = vcmask 458112
    %65 = vst.msk [vmem:[#allocation0] sm:$0x1] %vm64, %v63
    %s66 = scalar_lea.vmem %s0, 5
    %v67 = vld [vmem:[%s66] sm:$0x1]
    %68 = vrot.lane.b32.xlu0 %v67, 40
    %v69 = vpop.permute.xlu0 %68
    %vm70 = vcmask 392512
    %71 = vst.msk [vmem:[#allocation0] sm:$0x1] %vm70, %v69
    %s72 = scalar_lea.vmem %s0, 4
    %v73 = vld [vmem:[%s72] sm:$0x1]
    %74 = vrot.lane.b32.xlu0 %v73, 32
    %v75 = vpop.permute.xlu0 %74
    %vm76 = vcmask 326912
    %77 = vst.msk [vmem:[#allocation0] sm:$0x1] %vm76, %v75
    %s78 = scalar_lea.vmem %s0, 3
    %v79 = vld [vmem:[%s78] sm:$0x1]
    %80 = vrot.lane.b32.xlu0 %v79, 24
    %v81 = vpop.permute.xlu0 %80
    %vm82 = vcmask 261312
    %83 = vst.msk [vmem:[#allocation0] sm:$0x1] %vm82, %v81
    %s84 = scalar_lea.vmem %s0, 2
    %v85 = vld [vmem:[%s84] sm:$0x1]
    %86 = vrot.lane.b32.xlu0 %v85, 16
    %v87 = vpop.permute.xlu0 %86
    %vm88 = vcmask 195712
    %89 = vst.msk [vmem:[#allocation0] sm:$0x1] %vm88, %v87
    %s90 = scalar_lea.vmem %s0, 1
    %v91 = vld [vmem:[%s90] sm:$0x1]
    %92 = vrot.lane.b32.xlu0 %v91, 8
    %v93 = vpop.permute.xlu0 %92
    %vm94 = vcmask 130112
    %95 = vst.msk [vmem:[#allocation0] sm:$0x1] %vm94, %v93
    %s97 = sshllo.u32 0, 1
    %v99 = vld [vmem:[#allocation0] sm:%s97]
    %s100 = sshllo.u32 0, 1
    %101 = vst [vmem:[%s1] sm:%s100] %v99
    %s102 = scalar_lea.vmem [#allocation0], 8
    %v103 = vld [vmem:[%s102] sm:%s97]
    %s104 = sshllo.u32 0, 1
    %s105 = scalar_lea.vmem %s1, 1
    %106 = vst [vmem:[%s105] sm:%s104] %v103

// kernel: deconv_forward.2
$region0: #{deconv_forward.2}
  #allocation0 [shape = 'u32[]', space=smem, size = 0x4, offset = 0x4, fixed_abs, tag = 'smem constant byte address 0x4 - core index']
  #allocation1 [shape = 'u32[144,128]{1,0:T(1,128)}', space=vmem, size = 0x12000, scoped, tag = 'internal scratch']
  %s0 = inlined_call_operand.vmem [shape: f32[512,4], index: 0, kind: input, shape index: {}]
  %s1 = inlined_call_operand.vmem [shape: f32[16,8], index: 1, kind: output, shape index: {}]
  %s2 = sld [smem:[#allocation0]]
  $region41: #{deconv_forward.2} parent=0
    _
  %s4 = ssub.s32 1, %s2
  %s5 = scalar_select 0, %s4, %s2
  loop: start=0, step=1, limit=4
  $region2: #{deconv_forward.2} parent=0 // loop_pre_header
    _
  $region3: #{deconv_forward.2} parent=0 // loop_header
    %s7 = sphi 0, %s11
    %p8 = scmp.ge.s32.totalorder %s7, 4
    %s14 = sphi 0, %s26
    %s15 = sphi 0, %s22
    %s16 = sphi 0, %s14
    %s17 = sphi 0, %s15
    %s18 = sphi 0, %s16
    %s19 = sphi 0, %s17
    %s31 = sphi 0, %s33
    %s34 = sphi 0, %s31
    %s35 = sphi 0, %s34
    %s51 = sphi 0, %s35
    %s57 = sphi 0, %s59
    %s60 = sphi 0, %s57
    %s61 = sphi 0, %s60
    %s77 = sphi 0, %s61
  $region4: #{deconv_forward.2} parent=0 // loop_header_branch
    %10 = sbr.rel (%p8) target = $region8
  $region5: #{deconv_forward.2} parent=0 // loop_body
    %s12 = ssub.s32 %s7, 1
    %s13 = ssub.s32 %s7, 2
    %s20 = sadd.s32 1, %s15
    %p21 = scmp.ge.s32.totalorder %s20, 1
    %s22 = scalar_select %p21, 0, %s20
    %s23 = sadd.s32 1, %s14
    %s24 = scalar_select %p21, %s23, %s14
    %p25 = scmp.ge.s32.totalorder %s24, 2
    %s26 = scalar_select %p25, 0, %s24
    %s27 = sadd.s32 %s14, %s15
    %s28 = sadd.s32 %s26, %s22
    %s29 = ssub.s32 %s27, %s28
    %p30 = scmp.eq.s32.totalorder %s29, 0
    %s32 = sadd.s32 %s31, 1
    %s33 = scalar_select %p30, %s31, %s32
    %p36 = pneg %p30
    %p37 = scmp.eq.s32.totalorder %s7, 1
    %p38 = por %p36, %p37
    %p39 = scmp.ne.s32.totalorder %s31, %s34
    %p40 = scmp.eq.s32.totalorder %s7, 0
    %p41 = por %p39, %p40
    %p42 = scmp.ne.s32.totalorder %s31, %s34
    %p43 = scmp.eq.s32.totalorder %s12, 1
    %p44 = por %p42, %p43
    %p45 = scmp.ne.s32.totalorder %s34, %s35
    %p46 = scmp.eq.s32.totalorder %s12, 0
    %p47 = por %p45, %p46
    %p48 = scmp.ne.s32.totalorder %s34, %s35
    %p49 = scmp.eq.s32.totalorder %s13, 1
    %p50 = por %p48, %p49
    %p52 = scmp.ne.s32.totalorder %s35, %s51
    %p53 = scmp.eq.s32.totalorder %s13, 0
    %p54 = por %p52, %p53
    %s55 = ssub.s32 %s14, %s26
    %p56 = scmp.eq.s32.totalorder %s55, 0
    %s58 = sadd.s32 %s57, 1
    %s59 = scalar_select %p56, %s57, %s58
    %p62 = pneg %p56
    %p63 = scmp.eq.s32.totalorder %s7, 1
    %p64 = por %p62, %p63
    %p65 = scmp.ne.s32.totalorder %s57, %s60
    %p66 = scmp.eq.s32.totalorder %s7, 0
    %p67 = por %p65, %p66
    %p68 = scmp.ne.s32.totalorder %s57, %s60
    %p69 = scmp.eq.s32.totalorder %s12, 1
    %p70 = por %p68, %p69
    %p71 = scmp.ne.s32.totalorder %s60, %s61
    %p72 = scmp.eq.s32.totalorder %s12, 0
    %p73 = por %p71, %p72
    %p74 = scmp.ne.s32.totalorder %s60, %s61
    %p75 = scmp.eq.s32.totalorder %s13, 1
    %p76 = por %p74, %p75
    %p78 = scmp.ne.s32.totalorder %s61, %s77
    %p79 = scmp.eq.s32.totalorder %s13, 0
    %p80 = por %p78, %p79
    %p81 = scmp.le.s32.totalorder 1, %s7
    %p82 = scmp.lt.s32.totalorder %s7, 3
    %p83 = pnand %p81, %p82
    %p84 = pneg %p83
    // Predicated region
    $region9: #{deconv_forward.2} parent=5 // pred_check
      _
    $region10: #{deconv_forward.2} parent=5 // pred_check_branch
      %86 = sbr.rel (%p83) target = $region12
    $region11: #{deconv_forward.2} parent=5 // pred_region
      %s87 = ssub.s32 %s7, 1
    $region12: #{deconv_forward.2} parent=5 // pred_fallthru
      _
    %p88 = scmp.lt.s32.totalorder %s7, 2
    // Predicated region
    $region13: #{deconv_forward.2} parent=5 // pred_check
      %p89 = pneg %p88
    $region14: #{deconv_forward.2} parent=5 // pred_check_branch
      %91 = sbr.rel (%p89) target = $region16
    $region15: #{deconv_forward.2} parent=5 // pred_region
      // Predicated region
      $region17: #{deconv_forward.2} parent=15 // pred_check
        %p92 = pneg %p41
      $region18: #{deconv_forward.2} parent=15 // pred_check_branch
        %94 = sbr.rel (%p92) target = $region20
      $region19: #{deconv_forward.2} parent=15 // pred_region
        %s95 = sadd.s32 %s14, %s15
        %s96 = smul.u32 32, %s95
        %p97 = scmp.lt.s32.totalorder %s96, 63
        %s98 = scalar_select %p97, %s96, 63
        %s99 = smul.addr %s98, 8
        %s100 = scalar_lea.vmem %s0, %s99
        %s101 = sadd.s32 %s14, %s15
        %s102 = smul.u32 32, %s101
      $region20: #{deconv_forward.2} parent=15 // pred_fallthru
        _
    $region16: #{deconv_forward.2} parent=5 // pred_fallthru
      _
    %p103 = scmp.le.s32.totalorder 1, %s7
    %p104 = scmp.lt.s32.totalorder %s7, 3
    %p105 = pnand %p103, %p104
    %p106 = pneg %p105
    // Predicated region
    $region21: #{deconv_forward.2} parent=5 // pred_check
      _
    $region22: #{deconv_forward.2} parent=5 // pred_check_branch
      %108 = sbr.rel (%p105) target = $region24
    $region23: #{deconv_forward.2} parent=5 // pred_region
      %s109 = ssub.s32 %s7, 1
      %s110 = sadd.s32 %s16, %s17
      %s111 = smul.u32 32, %s110
      %p112 = scmp.lt.s32.totalorder %s111, 63
      %s113 = scalar_select %p112, %s111, 63
      %s114 = smul.addr %s113, 8
      %s115 = scalar_lea.vmem %s0, %s114
      %p116 = pneg %p47
      %p117 = pneg %p44
      %p118 = pneg %p73
      %p119 = pneg %p70
      %p120 = scmp.lt.s32.totalorder %s16, 1
      %s121 = scalar_select %p120, %s16, 1
      %s122 = smul.addr %s121, 8
      %s123 = scalar_lea.vmem %s1, %s122
      %s124 = sadd.s32 %s16, %s17
      %s125 = smul.u32 32, %s124
      %p126 = scmp.lt.s32.totalorder %s125, 63
      %s127 = scalar_select %p126, %s125, 63
      %s128 = smul.addr %s127, 8
      %s129 = scalar_lea.vmem %s0, %s128
      %s130 = sadd.s32 %s16, %s17
      %s131 = smul.u32 32, %s130
      %p132 = scmp.lt.s32.totalorder %s16, 1
      %s133 = scalar_select %p132, %s16, 1
      %s134 = smul.addr %s133, 8
      %s135 = scalar_lea.vmem %s1, %s134
      %p136 = scmp.eq.s32.totalorder %s17, 0
      // Predicated region
      $region25: #{deconv_forward.2} parent=23 // pred_check
        %p137 = pneg %p136
      $region26: #{deconv_forward.2} parent=23 // pred_check_branch
        %139 = sbr.rel (%p137) target = $region28
      $region27: #{deconv_forward.2} parent=23 // pred_region
        %vm140 = vcmask 64512
        %141 = vst.msk [vmem:[%s135] sm:$0xff] %vm140, 0.0
      $region28: #{deconv_forward.2} parent=23 // pred_fallthru
        _
      %v142 = vld [vmem:[%s129] sm:$0xff]
      %v143 = vld [vmem:[%s129 + $0x8] sm:$0xff]
      %v144 = vld [vmem:[%s129 + $0x10] sm:$0xff]
      %v145 = vld [vmem:[%s129 + $0x18] sm:$0xff]
      %v146 = vld [vmem:[%s129 + $0x20] sm:$0xff]
      %v147 = vld [vmem:[%s129 + $0x28] sm:$0xff]
      %v148 = vld [vmem:[%s129 + $0x30] sm:$0xff]
      %v149 = vld [vmem:[%s129 + $0x38] sm:$0xff]
      %v150 = vld [vmem:[%s129 + $0x40] sm:$0xff]
      %v151 = vld [vmem:[%s129 + $0x48] sm:$0xff]
      %v152 = vld [vmem:[%s129 + $0x50] sm:$0xff]
      %v153 = vld [vmem:[%s129 + $0x58] sm:$0xff]
      %v154 = vld [vmem:[%s129 + $0x60] sm:$0xff]
      %v155 = vld [vmem:[%s129 + $0x68] sm:$0xff]
      %v156 = vld [vmem:[%s129 + $0x70] sm:$0xff]
      %v157 = vld [vmem:[%s129 + $0x78] sm:$0xff]
      %v158 = vld [vmem:[%s129 + $0x80] sm:$0xff]
      %v159 = vld [vmem:[%s129 + $0x88] sm:$0xff]
      %v160 = vld [vmem:[%s129 + $0x90] sm:$0xff]
      %v161 = vld [vmem:[%s129 + $0x98] sm:$0xff]
      %v162 = vld [vmem:[%s129 + $0xa0] sm:$0xff]
      %v163 = vld [vmem:[%s129 + $0xa8] sm:$0xff]
      %v164 = vld [vmem:[%s129 + $0xb0] sm:$0xff]
      %v165 = vld [vmem:[%s129 + $0xb8] sm:$0xff]
      %v166 = vld [vmem:[%s129 + $0xc0] sm:$0xff]
      %v167 = vld [vmem:[%s129 + $0xc8] sm:$0xff]
      %v168 = vld [vmem:[%s129 + $0xd0] sm:$0xff]
      %v169 = vld [vmem:[%s129 + $0xd8] sm:$0xff]
      %v170 = vld [vmem:[%s129 + $0xe0] sm:$0xff]
      %v171 = vld [vmem:[%s129 + $0xe8] sm:$0xff]
      %v172 = vld [vmem:[%s129 + $0xf0] sm:$0xff]
      %v173 = vld [vmem:[%s129 + $0xf8] sm:$0xff]
      %v174 = vmul.f32 %v142, %v142
      %v175 = vmul.f32 %v143, %v143
      %v176 = vmul.f32 %v144, %v144
      %v177 = vmul.f32 %v145, %v145
      %v178 = vmul.f32 %v146, %v146
      %v179 = vmul.f32 %v147, %v147
      %v180 = vmul.f32 %v148, %v148
      %v181 = vmul.f32 %v149, %v149
      %v182 = vmul.f32 %v150, %v150
      %v183 = vmul.f32 %v151, %v151
      %v184 = vmul.f32 %v152, %v152
      %v185 = vmul.f32 %v153, %v153
      %v186 = vmul.f32 %v154, %v154
      %v187 = vmul.f32 %v155, %v155
      %v188 = vmul.f32 %v156, %v156
      %v189 = vmul.f32 %v157, %v157
      %v190 = vmul.f32 %v158, %v158
      %v191 = vmul.f32 %v159, %v159
      %v192 = vmul.f32 %v160, %v160
      %v193 = vmul.f32 %v161, %v161
      %v194 = vmul.f32 %v162, %v162
      %v195 = vmul.f32 %v163, %v163
      %v196 = vmul.f32 %v164, %v164
      %v197 = vmul.f32 %v165, %v165
      %v198 = vmul.f32 %v166, %v166
      %v199 = vmul.f32 %v167, %v167
      %v200 = vmul.f32 %v168, %v168
      %v201 = vmul.f32 %v169, %v169
      %v202 = vmul.f32 %v170, %v170
      %v203 = vmul.f32 %v171, %v171
      %v204 = vmul.f32 %v172, %v172
      %v205 = vmul.f32 %v173, %v173
      %238 = vrot.lane.b32.xlu0 %v174, 4
      %v239 = vpop.permute.xlu0 %238
      %240 = vrot.lane.b32.xlu0 %v175, 4
      %v241 = vpop.permute.xlu0 %240
      %242 = vrot.lane.b32.xlu0 %v176, 4
      %v243 = vpop.permute.xlu0 %242
      %244 = vrot.lane.b32.xlu0 %v177, 4
      %v245 = vpop.permute.xlu0 %244
      %246 = vrot.lane.b32.xlu0 %v178, 4
      %v247 = vpop.permute.xlu0 %246
      %248 = vrot.lane.b32.xlu0 %v179, 4
      %v249 = vpop.permute.xlu0 %248
      %250 = vrot.lane.b32.xlu0 %v180, 4
      %v251 = vpop.permute.xlu0 %250
      %252 = vrot.lane.b32.xlu0 %v181, 4
      %v253 = vpop.permute.xlu0 %252
      %254 = vrot.lane.b32.xlu0 %v182, 4
      %v255 = vpop.permute.xlu0 %254
      %256 = vrot.lane.b32.xlu0 %v183, 4
      %v257 = vpop.permute.xlu0 %256
      %258 = vrot.lane.b32.xlu0 %v184, 4
      %v259 = vpop.permute.xlu0 %258
      %260 = vrot.lane.b32.xlu0 %v185, 4
      %v261 = vpop.permute.xlu0 %260
      %262 = vrot.lane.b32.xlu0 %v186, 4
      %v263 = vpop.permute.xlu0 %262
      %264 = vrot.lane.b32.xlu0 %v187, 4
      %v265 = vpop.permute.xlu0 %264
      %266 = vrot.lane.b32.xlu0 %v188, 4
      %v267 = vpop.permute.xlu0 %266
      %268 = vrot.lane.b32.xlu0 %v189, 4
      %v269 = vpop.permute.xlu0 %268
      %270 = vrot.lane.b32.xlu0 %v190, 4
      %v271 = vpop.permute.xlu0 %270
      %272 = vrot.lane.b32.xlu0 %v191, 4
      %v273 = vpop.permute.xlu0 %272
      %274 = vrot.lane.b32.xlu0 %v192, 4
      %v275 = vpop.permute.xlu0 %274
      %276 = vrot.lane.b32.xlu0 %v193, 4
      %v277 = vpop.permute.xlu0 %276
      %278 = vrot.lane.b32.xlu0 %v194, 4
      %v279 = vpop.permute.xlu0 %278
      %280 = vrot.lane.b32.xlu0 %v195, 4
      %v281 = vpop.permute.xlu0 %280
      %282 = vrot.lane.b32.xlu0 %v196, 4
      %v283 = vpop.permute.xlu0 %282
      %284 = vrot.lane.b32.xlu0 %v197, 4
      %v285 = vpop.permute.xlu0 %284
      %286 = vrot.lane.b32.xlu0 %v198, 4
      %v287 = vpop.permute.xlu0 %286
      %288 = vrot.lane.b32.xlu0 %v199, 4
      %v289 = vpop.permute.xlu0 %288
      %290 = vrot.lane.b32.xlu0 %v200, 4
      %v291 = vpop.permute.xlu0 %290
      %292 = vrot.lane.b32.xlu0 %v201, 4
      %v293 = vpop.permute.xlu0 %292
      %294 = vrot.lane.b32.xlu0 %v202, 4
      %v295 = vpop.permute.xlu0 %294
      %296 = vrot.lane.b32.xlu0 %v203, 4
      %v297 = vpop.permute.xlu0 %296
      %298 = vrot.lane.b32.xlu0 %v204, 4
      %v299 = vpop.permute.xlu0 %298
      %300 = vrot.lane.b32.xlu0 %v205, 4
      %v301 = vpop.permute.xlu0 %300
      %vm334 = vcmask 31744
      %v335 = vsel %vm334, %v142, %v239
      %v336 = vsel %vm334, %v143, %v241
      %v337 = vsel %vm334, %v144, %v243
      %v338 = vsel %vm334, %v145, %v245
      %v339 = vsel %vm334, %v146, %v247
      %v340 = vsel %vm334, %v147, %v249
      %v341 = vsel %vm334, %v148, %v251
      %v342 = vsel %vm334, %v149, %v253
      %v343 = vsel %vm334, %v150, %v255
      %v344 = vsel %vm334, %v151, %v257
      %v345 = vsel %vm334, %v152, %v259
      %v346 = vsel %vm334, %v153, %v261
      %v347 = vsel %vm334, %v154, %v263
      %v348 = vsel %vm334, %v155, %v265
      %v349 = vsel %vm334, %v156, %v267
      %v350 = vsel %vm334, %v157, %v269
      %v351 = vsel %vm334, %v158, %v271
      %v352 = vsel %vm334, %v159, %v273
      %v353 = vsel %vm334, %v160, %v275
      %v354 = vsel %vm334, %v161, %v277
      %v355 = vsel %vm334, %v162, %v279
      %v356 = vsel %vm334, %v163, %v281
      %v357 = vsel %vm334, %v164, %v283
      %v358 = vsel %vm334, %v165, %v285
      %v359 = vsel %vm334, %v166, %v287
      %v360 = vsel %vm334, %v167, %v289
      %v361 = vsel %vm334, %v168, %v291
      %v362 = vsel %vm334, %v169, %v293
      %v363 = vsel %vm334, %v170, %v295
      %v364 = vsel %vm334, %v171, %v297
      %v365 = vsel %vm334, %v172, %v299
      %v366 = vsel %vm334, %v173, %v301
      %v367 = vld [vmem:[%s135] sm:$0xff]
      %368 = vmatprep.subr.mxu0 0.0
      %369 = vmatpush1.msra.mxu0 %v335
      %370 = vmatprep.subr.mxu0 0.0
      %371 = vmatpush1.msra.mxu0 %v336
      %372 = vmatprep.subr.mxu0 0.0
      %373 = vmatpush1.msra.mxu0 %v337
      %374 = vmatprep.subr.mxu0 0.0
      %375 = vmatpush1.msra.mxu0 %v338
      %376 = vmatprep.subr.mxu0 0.0
      %377 = vmatpush1.msra.mxu0 %v339
      %378 = vmatprep.subr.mxu0 0.0
      %379 = vmatpush1.msra.mxu0 %v340
      %380 = vmatprep.subr.mxu0 0.0
      %381 = vmatpush1.msra.mxu0 %v341
      %382 = vmatprep.subr.mxu0 0.0
      %383 = vmatpush1.msra.mxu0 %v342
      %384 = vmatprep.subr.mxu0 0.0
      %385 = vmatpush1.msra.mxu0 %v343
      %386 = vmatprep.subr.mxu0 0.0
      %387 = vmatpush1.msra.mxu0 %v344
      %388 = vmatprep.subr.mxu0 0.0
      %389 = vmatpush1.msra.mxu0 %v345
      %390 = vmatprep.subr.mxu0 0.0
      %391 = vmatpush1.msra.mxu0 %v346
      %392 = vmatprep.subr.mxu0 0.0
      %393 = vmatpush1.msra.mxu0 %v347
      %394 = vmatprep.subr.mxu0 0.0
      %395 = vmatpush1.msra.mxu0 %v348
      %396 = vmatprep.subr.mxu0 0.0
      %397 = vmatpush1.msra.mxu0 %v349
      %398 = vmatprep.subr.mxu0 0.0
      %399 = vmatpush1.msra.mxu0 %v350
      %400 = vmatprep.subr.mxu0 0.0
      %401 = vmatpush1.msra.mxu0 %v351
      %402 = vmatprep.subr.mxu0 0.0
      %403 = vmatpush1.msra.mxu0 %v352
      %404 = vmatprep.subr.mxu0 0.0
      %405 = vmatpush1.msra.mxu0 %v353
      %406 = vmatprep.subr.mxu0 0.0
      %407 = vmatpush1.msra.mxu0 %v354
      %408 = vmatprep.subr.mxu0 0.0
      %409 = vmatpush1.msra.mxu0 %v355
      %410 = vmatprep.subr.mxu0 0.0
      %411 = vmatpush1.msra.mxu0 %v356
      %412 = vmatprep.subr.mxu0 0.0
      %413 = vmatpush1.msra.mxu0 %v357
      %414 = vmatprep.subr.mxu0 0.0
      %415 = vmatpush1.msra.mxu0 %v358
      %416 = vmatprep.subr.mxu0 0.0
      %417 = vmatpush1.msra.mxu0 %v359
      %418 = vmatprep.subr.mxu0 0.0
      %419 = vmatpush1.msra.mxu0 %v360
      %420 = vmatprep.subr.mxu0 0.0
      %421 = vmatpush1.msra.mxu0 %v361
      %422 = vmatprep.subr.mxu0 0.0
      %423 = vmatpush1.msra.mxu0 %v362
      %424 = vmatprep.subr.mxu0 0.0
      %425 = vmatpush1.msra.mxu0 %v363
      %426 = vmatprep.subr.mxu0 0.0
      %427 = vmatpush1.msra.mxu0 %v364
      %428 = vmatprep.subr.mxu0 0.0
      %429 = vmatpush1.msra.mxu0 %v365
      %430 = vmatprep.subr.mxu0 0.0
      %431 = vmatpush1.msra.mxu0 %v366
      %432 = vmatprep.mubr.f32.mxu0 1.0
      %433 = vmatmul.mubr.f32.gmra.mrb[0].mxu0 1.0
      %v434 = vpop.f32.mrb[0].mxu0
      %v435 = vadd.f32 0.0, %v434
      %v436 = vpop.f32.mrb[0].mxu0
      %437 = vdwg.mxu0
      %v438 = vadd.f32 %v367, %v435
      %vm439 = vcmask 64512
      %440 = vst.msk [vmem:[%s135] sm:$0xff] %vm439, %v438
      %p441 = scmp.lt.s32.totalorder %s16, 1
      %s442 = scalar_select %p441, %s16, 1
      %s443 = smul.addr %s442, 8
      %s444 = scalar_lea.vmem %s1, %s443
      // Predicated region
      $region29: #{deconv_forward.2} parent=23 // pred_check
        %p445 = pneg %p70
      $region30: #{deconv_forward.2} parent=23 // pred_check_branch
        %447 = sbr.rel (%p445) target = $region32
      $region31: #{deconv_forward.2} parent=23 // pred_region
        _
      $region32: #{deconv_forward.2} parent=23 // pred_fallthru
        _
    $region24: #{deconv_forward.2} parent=5 // pred_fallthru
      _
    %p448 = scmp.le.s32.totalorder 2, %s7
    // Predicated region
    $region33: #{deconv_forward.2} parent=5 // pred_check
      %p449 = pneg %p448
    $region34: #{deconv_forward.2} parent=5 // pred_check_branch
      %451 = sbr.rel (%p449) target = $region36
    $region35: #{deconv_forward.2} parent=5 // pred_region
      %s452 = ssub.s32 %s7, 2
      // Predicated region
      $region37: #{deconv_forward.2} parent=35 // pred_check
        %p453 = pneg %p76
      $region38: #{deconv_forward.2} parent=35 // pred_check_branch
        %455 = sbr.rel (%p453) target = $region40
      $region39: #{deconv_forward.2} parent=35 // pred_region
        %p456 = scmp.lt.s32.totalorder %s18, 1
        %s457 = scalar_select %p456, %s18, 1
        %s458 = smul.addr %s457, 8
        %s459 = scalar_lea.vmem %s1, %s458
      $region40: #{deconv_forward.2} parent=35 // pred_fallthru
        _
    $region36: #{deconv_forward.2} parent=5 // pred_fallthru
      _
  $region6: #{deconv_forward.2} parent=0 // loop_footer
    %s11 = sadd.s32 1, %s7
  $region7: #{deconv_forward.2} parent=0 // loop_footer_branch
    %6 = sbr.rel target = $region3
  $region8: #{deconv_forward.2} parent=0 // loop_exit
    _

// kernel: deconv_forward.3
$region0: #{deconv_forward.3}
  #allocation0 [shape = 'u32[]', space=smem, size = 0x4, offset = 0x4, fixed_abs, tag = 'smem constant byte address 0x4 - core index']
  #allocation1 [shape = 'u32[144,128]{1,0:T(1,128)}', space=vmem, size = 0x12000, scoped, tag = 'internal scratch']
  %s0 = inlined_call_operand.vmem [shape: f32[2,16,64], index: 0, kind: input, shape index: {}]
  %s1 = inlined_call_operand.vmem [shape: f32[1,64], index: 1, kind: input, shape index: {}]
  %s2 = inlined_call_operand.vmem [shape: f32[1,64], index: 2, kind: input, shape index: {}]
  %s3 = inlined_call_operand.vmem [shape: f32[1,136], index: 3, kind: input, shape index: {}]
  %s4 = inlined_call_operand.vmem [shape: f32[4,2,64,136], index: 4, kind: input, shape index: {}]
  %s5 = inlined_call_operand.vmem [shape: f32[8,17,136], index: 5, kind: output, shape index: {}]
  %s6 = sld [smem:[#allocation0]]
  $region53: #{deconv_forward.3} parent=0
    _
  %s8 = ssub.s32 1, %s6
  %s9 = scalar_select 0, %s8, %s6
  loop: start=0, step=1, limit=4
  $region2: #{deconv_forward.3} parent=0 // loop_pre_header
    _
  $region3: #{deconv_forward.3} parent=0 // loop_header
    %s11 = sphi 0, %s15
    %p12 = scmp.ge.s32.totalorder %s11, 4
    %s21 = sphi 0, %s23
    %s24 = sphi 0, %s21
    %s25 = sphi 0, %s24
    %s41 = sphi 0, %s25
    %s45 = sphi 0, %s45
    %s47 = sphi 0, %s45
    %s48 = sphi 0, %s47
    %s62 = sphi 0, %s48
    %s66 = sphi 0, %s66
    %s68 = sphi 0, %s66
    %s69 = sphi 0, %s68
    %s83 = sphi 0, %s69
    %s87 = sphi 0, %s87
    %s89 = sphi 0, %s87
    %s90 = sphi 0, %s89
    %s104 = sphi 0, %s90
    %s108 = sphi 0, %s108
    %s110 = sphi 0, %s108
    %s111 = sphi 0, %s110
    %s125 = sphi 0, %s111
    %s131 = sphi 0, %s133
    %s134 = sphi 0, %s131
    %s135 = sphi 0, %s134
    %s151 = sphi 0, %s135
  $region4: #{deconv_forward.3} parent=0 // loop_header_branch
    %14 = sbr.rel (%p12) target = $region8
  $region5: #{deconv_forward.3} parent=0 // loop_body
    %s16 = ssub.s32 %s11, 1
    %s17 = ssub.s32 %s11, 2
    %s18 = sadd.s32 %s11, 1
    %s19 = ssub.s32 %s11, %s18
    %p20 = scmp.eq.s32.totalorder %s19, 0
    %s22 = sadd.s32 %s21, 1
    %s23 = scalar_select %p20, %s21, %s22
    %p26 = pneg %p20
    %p27 = scmp.eq.s32.totalorder %s11, 1
    %p28 = por %p26, %p27
    %p29 = scmp.ne.s32.totalorder %s21, %s24
    %p30 = scmp.eq.s32.totalorder %s11, 0
    %p31 = por %p29, %p30
    %p32 = scmp.ne.s32.totalorder %s21, %s24
    %p33 = scmp.eq.s32.totalorder %s16, 1
    %p34 = por %p32, %p33
    %p35 = scmp.ne.s32.totalorder %s24, %s25
    %p36 = scmp.eq.s32.totalorder %s16, 0
    %p37 = por %p35, %p36
    %p38 = scmp.ne.s32.totalorder %s24, %s25
    %p39 = scmp.eq.s32.totalorder %s17, 1
    %p40 = por %p38, %p39
    %p42 = scmp.ne.s32.totalorder %s25, %s41
    %p43 = scmp.eq.s32.totalorder %s17, 0
    %p44 = por %p42, %p43
    %s46 = sadd.s32 %s45, 1
    %p49 = scmp.eq.s32.totalorder %s11, 1
    %p50 = scmp.ne.s32.totalorder %s45, %s47
    %p51 = scmp.eq.s32.totalorder %s11, 0
    %p52 = por %p50, %p51
    %p53 = scmp.ne.s32.totalorder %s45, %s47
    %p54 = scmp.eq.s32.totalorder %s16, 1
    %p55 = por %p53, %p54
    %p56 = scmp.ne.s32.totalorder %s47, %s48
    %p57 = scmp.eq.s32.totalorder %s16, 0
    %p58 = por %p56, %p57
    %p59 = scmp.ne.s32.totalorder %s47, %s48
    %p60 = scmp.eq.s32.totalorder %s17, 1
    %p61 = por %p59, %p60
    %p63 = scmp.ne.s32.totalorder %s48, %s62
    %p64 = scmp.eq.s32.totalorder %s17, 0
    %p65 = por %p63, %p64
    %s67 = sadd.s32 %s66, 1
    %p70 = scmp.eq.s32.totalorder %s11, 1
    %p71 = scmp.ne.s32.totalorder %s66, %s68
    %p72 = scmp.eq.s32.totalorder %s11, 0
    %p73 = por %p71, %p72
    %p74 = scmp.ne.s32.totalorder %s66, %s68
    %p75 = scmp.eq.s32.totalorder %s16, 1
    %p76 = por %p74, %p75
    %p77 = scmp.ne.s32.totalorder %s68, %s69
    %p78 = scmp.eq.s32.totalorder %s16, 0
    %p79 = por %p77, %p78
    %p80 = scmp.ne.s32.totalorder %s68, %s69
    %p81 = scmp.eq.s32.totalorder %s17, 1
    %p82 = por %p80, %p81
    %p84 = scmp.ne.s32.totalorder %s69, %s83
    %p85 = scmp.eq.s32.totalorder %s17, 0
    %p86 = por %p84, %p85
    %s88 = sadd.s32 %s87, 1
    %p91 = scmp.eq.s32.totalorder %s11, 1
    %p92 = scmp.ne.s32.totalorder %s87, %s89
    %p93 = scmp.eq.s32.totalorder %s11, 0
    %p94 = por %p92, %p93
    %p95 = scmp.ne.s32.totalorder %s87, %s89
    %p96 = scmp.eq.s32.totalorder %s16, 1
    %p97 = por %p95, %p96
    %p98 = scmp.ne.s32.totalorder %s89, %s90
    %p99 = scmp.eq.s32.totalorder %s16, 0
    %p100 = por %p98, %p99
    %p101 = scmp.ne.s32.totalorder %s89, %s90
    %p102 = scmp.eq.s32.totalorder %s17, 1
    %p103 = por %p101, %p102
    %p105 = scmp.ne.s32.totalorder %s90, %s104
    %p106 = scmp.eq.s32.totalorder %s17, 0
    %p107 = por %p105, %p106
    %s109 = sadd.s32 %s108, 1
    %p112 = scmp.eq.s32.totalorder %s11, 1
    %p113 = scmp.ne.s32.totalorder %s108, %s110
    %p114 = scmp.eq.s32.totalorder %s11, 0
    %p115 = por %p113, %p114
    %p116 = scmp.ne.s32.totalorder %s108, %s110
    %p117 = scmp.eq.s32.totalorder %s16, 1
    %p118 = por %p116, %p117
    %p119 = scmp.ne.s32.totalorder %s110, %s111
    %p120 = scmp.eq.s32.totalorder %s16, 0
    %p121 = por %p119, %p120
    %p122 = scmp.ne.s32.totalorder %s110, %s111
    %p123 = scmp.eq.s32.totalorder %s17, 1
    %p124 = por %p122, %p123
    %p126 = scmp.ne.s32.totalorder %s111, %s125
    %p127 = scmp.eq.s32.totalorder %s17, 0
    %p128 = por %p126, %p127
    %s129 = ssub.s32 %s11, %s18
    %p130 = scmp.eq.s32.totalorder %s129, 0
    %s132 = sadd.s32 %s131, 1
    %s133 = scalar_select %p130, %s131, %s132
    %p136 = pneg %p130
    %p137 = scmp.eq.s32.totalorder %s11, 1
    %p138 = por %p136, %p137
    %p139 = scmp.ne.s32.totalorder %s131, %s134
    %p140 = scmp.eq.s32.totalorder %s11, 0
    %p141 = por %p139, %p140
    %p142 = scmp.ne.s32.totalorder %s131, %s134
    %p143 = scmp.eq.s32.totalorder %s16, 1
    %p144 = por %p142, %p143
    %p145 = scmp.ne.s32.totalorder %s134, %s135
    %p146 = scmp.eq.s32.totalorder %s16, 0
    %p147 = por %p145, %p146
    %p148 = scmp.ne.s32.totalorder %s134, %s135
    %p149 = scmp.eq.s32.totalorder %s17, 1
    %p150 = por %p148, %p149
    %p152 = scmp.ne.s32.totalorder %s135, %s151
    %p153 = scmp.eq.s32.totalorder %s17, 0
    %p154 = por %p152, %p153
    %p155 = scmp.le.s32.totalorder 1, %s11
    %p156 = scmp.lt.s32.totalorder %s11, 3
    %p157 = pnand %p155, %p156
    %p158 = pneg %p157
    // Predicated region
    $region9: #{deconv_forward.3} parent=5 // pred_check
      _
    $region10: #{deconv_forward.3} parent=5 // pred_check_branch
      %160 = sbr.rel (%p157) target = $region12
    $region11: #{deconv_forward.3} parent=5 // pred_region
      %s161 = ssub.s32 %s11, 1
      // Predicated region
      $region13: #{deconv_forward.3} parent=11 // pred_check
        %p162 = pneg %p58
      $region14: #{deconv_forward.3} parent=11 // pred_check_branch
        %164 = sbr.rel (%p162) target = $region16
      $region15: #{deconv_forward.3} parent=11 // pred_region
        _
      $region16: #{deconv_forward.3} parent=11 // pred_fallthru
        _
      // Predicated region
      $region17: #{deconv_forward.3} parent=11 // pred_check
        %p165 = pneg %p79
      $region18: #{deconv_forward.3} parent=11 // pred_check_branch
        %167 = sbr.rel (%p165) target = $region20
      $region19: #{deconv_forward.3} parent=11 // pred_region
        _
      $region20: #{deconv_forward.3} parent=11 // pred_fallthru
        _
      // Predicated region
      $region21: #{deconv_forward.3} parent=11 // pred_check
        %p168 = pneg %p100
      $region22: #{deconv_forward.3} parent=11 // pred_check_branch
        %170 = sbr.rel (%p168) target = $region24
      $region23: #{deconv_forward.3} parent=11 // pred_region
        _
      $region24: #{deconv_forward.3} parent=11 // pred_fallthru
        _
      // Predicated region
      $region25: #{deconv_forward.3} parent=11 // pred_check
        %p171 = pneg %p121
      $region26: #{deconv_forward.3} parent=11 // pred_check_branch
        %173 = sbr.rel (%p171) target = $region28
      $region27: #{deconv_forward.3} parent=11 // pred_region
        _
      $region28: #{deconv_forward.3} parent=11 // pred_fallthru
        _
    $region12: #{deconv_forward.3} parent=5 // pred_fallthru
      _
    %p174 = scmp.lt.s32.totalorder %s11, 2
    // Predicated region
    $region29: #{deconv_forward.3} parent=5 // pred_check
      %p175 = pneg %p174
    $region30: #{deconv_forward.3} parent=5 // pred_check_branch
      %177 = sbr.rel (%p175) target = $region32
    $region31: #{deconv_forward.3} parent=5 // pred_region
      // Predicated region
      $region33: #{deconv_forward.3} parent=31 // pred_check
        %p178 = pneg %p31
      $region34: #{deconv_forward.3} parent=31 // pred_check_branch
        %180 = sbr.rel (%p178) target = $region36
      $region35: #{deconv_forward.3} parent=31 // pred_region
        %p181 = scmp.lt.s32.totalorder %s11, 1
        %s182 = scalar_select %p181, %s11, 1
        %s183 = smul.addr %s182, 2
        %s184 = smul.addr %s183, 8
        %s185 = scalar_lea.vmem %s0, %s184
      $region36: #{deconv_forward.3} parent=31 // pred_fallthru
        _
    $region32: #{deconv_forward.3} parent=5 // pred_fallthru
      _
    %p186 = scmp.le.s32.totalorder 1, %s11
    %p187 = scmp.lt.s32.totalorder %s11, 3
    %p188 = pnand %p186, %p187
    %p189 = pneg %p188
    // Predicated region
    $region37: #{deconv_forward.3} parent=5 // pred_check
      _
    $region38: #{deconv_forward.3} parent=5 // pred_check_branch
      %191 = sbr.rel (%p188) target = $region40
    $region39: #{deconv_forward.3} parent=5 // pred_region
      %s192 = ssub.s32 %s11, 1
      %p193 = scmp.lt.s32.totalorder %s16, 1
      %s194 = scalar_select %p193, %s16, 1
      %s195 = smul.addr %s194, 2
      %s196 = smul.addr %s195, 8
      %s197 = scalar_lea.vmem %s0, %s196
      %p198 = pneg %p37
      %p199 = pneg %p34
      %p200 = pneg %p58
      %p201 = pneg %p55
      %p202 = pneg %p79
      %p203 = pneg %p76
      %p204 = pneg %p100
      %p205 = pneg %p97
      %p206 = pneg %p121
      %p207 = pneg %p118
      %p208 = pneg %p147
      %p209 = pneg %p144
      %s210 = smul.u32 4, %s16
      %p211 = scmp.lt.s32.totalorder %s210, 7
      %s212 = scalar_select %p211, %s210, 7
      %s213 = smul.addr %s212, 6
      %s214 = smul.addr %s213, 8
      %s215 = scalar_lea.vmem %s5, %s214
      %p216 = scmp.lt.s32.totalorder %s16, 1
      %s217 = scalar_select %p216, %s16, 1
      %s218 = smul.addr %s217, 2
      %s219 = smul.addr %s218, 8
      %s220 = scalar_lea.vmem %s0, %s219
      %s221 = smul.u32 4, %s16
      %p222 = scmp.lt.s32.totalorder %s221, 7
      %s223 = scalar_select %p222, %s221, 7
      %s224 = smul.addr %s223, 6
      %s225 = smul.addr %s224, 8
      %s226 = scalar_lea.vmem %s5, %s225
      %s227 = smul.u32 4, %s16
      %v228 = vld [vmem:[%s220] sm:$0xff]
      %v229 = vld [vmem:[%s220 + $0x8] sm:$0xff]
      %v230 = vld [vmem:[%s1] sm:$0x1]
      %v232 = vlaneseq
      %v233 = vshrl.u32 %v232, 7
      %v234 = vsub.s32 0, %v233
      %v235 = vrot.slane %v230, %v234
      %v237 = vmul.f32 %v228, %v235
      %v238 = vmul.f32 %v229, %v235
      %v239 = vld [vmem:[%s2] sm:$0x1]
      %v241 = vlaneseq
      %v242 = vshrl.u32 %v241, 7
      %v243 = vsub.s32 0, %v242
      %v244 = vrot.slane %v239, %v243
      %v246 = vadd.f32 %v237, %v244
      %v247 = vadd.f32 %v238, %v244
      %v248 = vmax.f32 %v246, 0.0
      %v249 = vmax.f32 %v247, 0.0
      %v250 = vld [vmem:[%s3] sm:$0x3]
      %v252 = vlaneseq
      %v253 = vshrl.u32 %v252, 7
      %v254 = vsub.s32 0, %v253
      %v255 = vrot.slane %v250, %v254
      %v256 = vlaneseq
      %v257 = vshrl.u32 %v256, 7
      %v258 = vsub.s32 1, %v257
      %v259 = vrot.slane %v250, %v258
      %262 = vst [vmem:[%s226] sm:$0xff] %v255
      %vm263 = vcmask 64512
      %264 = vst.msk [vmem:[%s226 + $0x8] sm:$0xff] %vm263, %v259
      %265 = vst [vmem:[%s226 + $0x10] sm:$0xff] %v255
      %266 = vst.msk [vmem:[%s226 + $0x18] sm:$0xff] %vm263, %v259
      %267 = vst [vmem:[%s226 + $0x20] sm:$0x1] %v255
      %vm268 = vcmask 57344
      %269 = vst.msk [vmem:[%s226 + $0x28] sm:$0x1] %vm268, %v259
      %270 = vst [vmem:[%s226 + $0x30] sm:$0xff] %v255
      %271 = vst.msk [vmem:[%s226 + $0x38] sm:$0xff] %vm263, %v259
      %272 = vst [vmem:[%s226 + $0x40] sm:$0xff] %v255
      %273 = vst.msk [vmem:[%s226 + $0x48] sm:$0xff] %vm263, %v259
      %274 = vst [vmem:[%s226 + $0x50] sm:$0x1] %v255
      %275 = vst.msk [vmem:[%s226 + $0x58] sm:$0x1] %vm268, %v259
      %276 = vst [vmem:[%s226 + $0x60] sm:$0xff] %v255
      %277 = vst.msk [vmem:[%s226 + $0x68] sm:$0xff] %vm263, %v259
      %278 = vst [vmem:[%s226 + $0x70] sm:$0xff] %v255
      %279 = vst.msk [vmem:[%s226 + $0x78] sm:$0xff] %vm263, %v259
      %280 = vst [vmem:[%s226 + $0x80] sm:$0x1] %v255
      %281 = vst.msk [vmem:[%s226 + $0x88] sm:$0x1] %vm268, %v259
      %282 = vst [vmem:[%s226 + $0x90] sm:$0xff] %v255
      %283 = vst.msk [vmem:[%s226 + $0x98] sm:$0xff] %vm263, %v259
      %284 = vst [vmem:[%s226 + $0xa0] sm:$0xff] %v255
      %285 = vst.msk [vmem:[%s226 + $0xa8] sm:$0xff] %vm263, %v259
      %286 = vst [vmem:[%s226 + $0xb0] sm:$0x1] %v255
      %287 = vst.msk [vmem:[%s226 + $0xb8] sm:$0x1] %vm268, %v259
      %v288 = vld [vmem:[%s4] sm:$0xff]
      %v289 = vld [vmem:[%s4 + $0x8] sm:$0xff]
      %v290 = vld [vmem:[%s4 + $0x10] sm:$0xff]
      %v291 = vld [vmem:[%s4 + $0x18] sm:$0xff]
      %v292 = vld [vmem:[%s4 + $0x20] sm:$0xff]
      %v293 = vld [vmem:[%s4 + $0x28] sm:$0xff]
      %v294 = vld [vmem:[%s4 + $0x30] sm:$0xff]
      %v295 = vld [vmem:[%s4 + $0x38] sm:$0xff]
      %v296 = vld [vmem:[%s4 + $0x40] sm:$0xff]
      %v297 = vld [vmem:[%s4 + $0x48] sm:$0xff]
      %v298 = vld [vmem:[%s4 + $0x50] sm:$0xff]
      %v299 = vld [vmem:[%s4 + $0x58] sm:$0xff]
      %v300 = vld [vmem:[%s4 + $0x60] sm:$0xff]
      %v301 = vld [vmem:[%s4 + $0x68] sm:$0xff]
      %v302 = vld [vmem:[%s4 + $0x70] sm:$0xff]
      %v303 = vld [vmem:[%s4 + $0x78] sm:$0xff]
      %vm304 = vcmask 523264
      %v306 = vsel %vm304, %v248, 0
      %v309 = vsel %vm304, %v249, 0
      %311 = vmatprep.subr.mxu0 %v289
      %312 = vmatpush1.msra.mxu0 %v288
      %313 = vmatprep.subr.mxu0 %v291
      %314 = vmatpush1.msra.mxu0 %v290
      %315 = vmatprep.subr.mxu0 %v293
      %316 = vmatpush1.msra.mxu0 %v292
      %317 = vmatprep.subr.mxu0 %v295
      %318 = vmatpush1.msra.mxu0 %v294
      %319 = vmatprep.subr.mxu0 %v297
      %320 = vmatpush1.msra.mxu0 %v296
      %321 = vmatprep.subr.mxu0 %v299
      %322 = vmatpush1.msra.mxu0 %v298
      %323 = vmatprep.subr.mxu0 %v301
      %324 = vmatpush1.msra.mxu0 %v300
      %325 = vmatprep.subr.mxu0 %v303
      %326 = vmatpush1.msra.mxu0 %v302
      %327 = vmatprep.subr.mxu0 0.0
      %328 = vmatpush1.msra.mxu0 0.0
      %329 = vmatprep.subr.mxu0 0.0
      %330 = vmatpush1.msra.mxu0 0.0
      %331 = vmatprep.subr.mxu0 0.0
      %332 = vmatpush1.msra.mxu0 0.0
      %333 = vmatprep.subr.mxu0 0.0
      %334 = vmatpush1.msra.mxu0 0.0
      %335 = vmatprep.subr.mxu0 0.0
      %336 = vmatpush1.msra.mxu0 0.0
      %337 = vmatprep.subr.mxu0 0.0
      %338 = vmatpush1.msra.mxu0 0.0
      %339 = vmatprep.subr.mxu0 0.0
      %340 = vmatpush1.msra.mxu0 0.0
      %341 = vmatprep.subr.mxu0 0.0
      %342 = vmatpush1.msra.mxu0 0.0
      %343 = vmatprep.subr.mxu0 0.0
      %344 = vmatpush1.msra.mxu0 0.0
      %345 = vmatprep.subr.mxu0 0.0
      %346 = vmatpush1.msra.mxu0 0.0
      %347 = vmatprep.subr.mxu0 0.0
      %348 = vmatpush1.msra.mxu0 0.0
      %349 = vmatprep.subr.mxu0 0.0
      %350 = vmatpush1.msra.mxu0 0.0
      %351 = vmatprep.subr.mxu0 0.0
      %352 = vmatpush1.msra.mxu0 0.0
      %353 = vmatprep.subr.mxu0 0.0
      %354 = vmatpush1.msra.mxu0 0.0
      %355 = vmatprep.subr.mxu0 0.0
      %356 = vmatpush1.msra.mxu0 0.0
      %357 = vmatprep.subr.mxu0 0.0
      %358 = vmatpush1.msra.mxu0 0.0
      %359 = vmatprep.subr.mxu0 0.0
      %360 = vmatpush1.msra.mxu0 0.0
      %361 = vmatprep.subr.mxu0 0.0
      %362 = vmatpush1.msra.mxu0 0.0
      %363 = vmatprep.subr.mxu0 0.0
      %364 = vmatpush1.msra.mxu0 0.0
      %365 = vmatprep.subr.mxu0 0.0
      %366 = vmatpush1.msra.mxu0 0.0
      %367 = vmatprep.subr.mxu0 0.0
      %368 = vmatpush1.msra.mxu0 0.0
      %369 = vmatprep.subr.mxu0 0.0
      %370 = vmatpush1.msra.mxu0 0.0
      %371 = vmatprep.subr.mxu0 0.0
      %372 = vmatpush1.msra.mxu0 0.0
      %373 = vmatprep.subr.mxu0 0.0
      %374 = vmatpush1.msra.mxu0 0.0
      %375 = vmatprep.mubr.f32.mxu0 0.0
      %376 = vmatmul.mubr.f32.gmra.mrb[0].mxu0 %v306
      %v377 = vpop.f32.mrb[0].mxu0
      %v378 = vadd.f32 0.0, %v377
      %v379 = vpop.f32.mrb[0].mxu0
      %v380 = vadd.f32 0.0, %v379
      %381 = vmatprep.mubr.f32.mxu0 0.0
      %382 = vmatmul.mubr.f32.gmra.mrb[0].mxu0 %v309
      %v383 = vpop.f32.mrb[0].mxu0
      %v384 = vadd.f32 0.0, %v383
      %v385 = vpop.f32.mrb[0].mxu0
      %v386 = vadd.f32 0.0, %v385
      %387 = vdwg.mxu0
      %v388 = vld [vmem:[%s226] sm:$0xff]
      %v389 = vld [vmem:[%s226 + $0x8] sm:$0xff]
      %v390 = vld [vmem:[%s226 + $0x10] sm:$0xff]
      %v391 = vld [vmem:[%s226 + $0x18] sm:$0xff]
      %v392 = vadd.f32 %v388, %v378
      %v393 = vadd.f32 %v389, %v380
      %v394 = vadd.f32 %v390, %v384
      %v395 = vadd.f32 %v391, %v386
      %396 = vst [vmem:[%s226] sm:$0xff] %v392
      %397 = vst.msk [vmem:[%s226 + $0x8] sm:$0xff] %vm263, %v393
      %398 = vst [vmem:[%s226 + $0x10] sm:$0xff] %v394
      %399 = vst.msk [vmem:[%s226 + $0x18] sm:$0xff] %vm263, %v395
      %s400 = scalar_lea.vmem %s4, 128
      %v401 = vld [vmem:[%s400] sm:$0xff]
      %v402 = vld [vmem:[%s400 + $0x8] sm:$0xff]
      %v403 = vld [vmem:[%s400 + $0x10] sm:$0xff]
      %v404 = vld [vmem:[%s400 + $0x18] sm:$0xff]
      %v405 = vld [vmem:[%s400 + $0x20] sm:$0xff]
      %v406 = vld [vmem:[%s400 + $0x28] sm:$0xff]
      %v407 = vld [vmem:[%s400 + $0x30] sm:$0xff]
      %v408 = vld [vmem:[%s400 + $0x38] sm:$0xff]
      %v409 = vld [vmem:[%s400 + $0x40] sm:$0xff]
      %v410 = vld [vmem:[%s400 + $0x48] sm:$0xff]
      %v411 = vld [vmem:[%s400 + $0x50] sm:$0xff]
      %v412 = vld [vmem:[%s400 + $0x58] sm:$0xff]
      %v413 = vld [vmem:[%s400 + $0x60] sm:$0xff]
      %v414 = vld [vmem:[%s400 + $0x68] sm:$0xff]
      %v415 = vld [vmem:[%s400 + $0x70] sm:$0xff]
      %v416 = vld [vmem:[%s400 + $0x78] sm:$0xff]
      %417 = vmatprep.subr.mxu0 %v402
      %418 = vmatpush1.msra.mxu0 %v401
      %419 = vmatprep.subr.mxu0 %v404
      %420 = vmatpush1.msra.mxu0 %v403
      %421 = vmatprep.subr.mxu0 %v406
      %422 = vmatpush1.msra.mxu0 %v405
      %423 = vmatprep.subr.mxu0 %v408
      %424 = vmatpush1.msra.mxu0 %v407
      %425 = vmatprep.subr.mxu0 %v410
      %426 = vmatpush1.msra.mxu0 %v409
      %427 = vmatprep.subr.mxu0 %v412
      %428 = vmatpush1.msra.mxu0 %v411
      %429 = vmatprep.subr.mxu0 %v414
      %430 = vmatpush1.msra.mxu0 %v413
      %431 = vmatprep.subr.mxu0 %v416
      %432 = vmatpush1.msra.mxu0 %v415
      %433 = vmatprep.subr.mxu0 0.0
      %434 = vmatpush1.msra.mxu0 0.0
      %435 = vmatprep.subr.mxu0 0.0
      %436 = vmatpush1.msra.mxu0 0.0
      %437 = vmatprep.subr.mxu0 0.0
      %438 = vmatpush1.msra.mxu0 0.0
      %439 = vmatprep.subr.mxu0 0.0
      %440 = vmatpush1.msra.mxu0 0.0
      %441 = vmatprep.subr.mxu0 0.0
      %442 = vmatpush1.msra.mxu0 0.0
      %443 = vmatprep.subr.mxu0 0.0
      %444 = vmatpush1.msra.mxu0 0.0
      %445 = vmatprep.subr.mxu0 0.0
      %446 = vmatpush1.msra.mxu0 0.0
      %447 = vmatprep.subr.mxu0 0.0
      %448 = vmatpush1.msra.mxu0 0.0
      %449 = vmatprep.subr.mxu0 0.0
      %450 = vmatpush1.msra.mxu0 0.0
      %451 = vmatprep.subr.mxu0 0.0
      %452 = vmatpush1.msra.mxu0 0.0
      %453 = vmatprep.subr.mxu0 0.0
      %454 = vmatpush1.msra.mxu0 0.0
      %455 = vmatprep.subr.mxu0 0.0
      %456 = vmatpush1.msra.mxu0 0.0
      %457 = vmatprep.subr.mxu0 0.0
      %458 = vmatpush1.msra.mxu0 0.0
      %459 = vmatprep.subr.mxu0 0.0
      %460 = vmatpush1.msra.mxu0 0.0
      %461 = vmatprep.subr.mxu0 0.0
      %462 = vmatpush1.msra.mxu0 0.0
      %463 = vmatprep.subr.mxu0 0.0
      %464 = vmatpush1.msra.mxu0 0.0
      %465 = vmatprep.subr.mxu0 0.0
      %466 = vmatpush1.msra.mxu0 0.0
      %467 = vmatprep.subr.mxu0 0.0
      %468 = vmatpush1.msra.mxu0 0.0
      %469 = vmatprep.subr.mxu0 0.0
      %470 = vmatpush1.msra.mxu0 0.0
      %471 = vmatprep.subr.mxu0 0.0
      %472 = vmatpush1.msra.mxu0 0.0
      %473 = vmatprep.subr.mxu0 0.0
      %474 = vmatpush1.msra.mxu0 0.0
      %475 = vmatprep.subr.mxu0 0.0
      %476 = vmatpush1.msra.mxu0 0.0
      %477 = vmatprep.subr.mxu0 0.0
      %478 = vmatpush1.msra.mxu0 0.0
      %479 = vmatprep.subr.mxu0 0.0
      %480 = vmatpush1.msra.mxu0 0.0
      %481 = vmatprep.mubr.f32.mxu0 0.0
      %482 = vmatmul.mubr.f32.gmra.mrb[0].mxu0 %v306
      %v483 = vpop.f32.mrb[0].mxu0
      %v484 = vadd.f32 0.0, %v483
      %v485 = vpop.f32.mrb[0].mxu0
      %v486 = vadd.f32 0.0, %v485
      %487 = vmatprep.mubr.f32.mxu0 0.0
      %488 = vmatmul.mubr.f32.gmra.mrb[0].mxu0 %v309
      %v489 = vpop.f32.mrb[0].mxu0
      %v490 = vadd.f32 0.0, %v489
      %v491 = vpop.f32.mrb[0].mxu0
      %v492 = vadd.f32 0.0, %v491
      %493 = vdwg.mxu0
      %s494 = scalar_lea.vmem %s226, 48
      %v495 = vld [vmem:[%s494] sm:$0xff]
      %v496 = vld [vmem:[%s494 + $0x8] sm:$0xff]
      %v497 = vld [vmem:[%s494 + $0x10] sm:$0xff]
      %v498 = vld [vmem:[%s494 + $0x18] sm:$0xff]
      %v499 = vadd.f32 %v495, %v484
      %v500 = vadd.f32 %v496, %v486
      %v501 = vadd.f32 %v497, %v490
      %v502 = vadd.f32 %v498, %v492
      %503 = vst [vmem:[%s494] sm:$0xff] %v499
      %504 = vst.msk [vmem:[%s494 + $0x8] sm:$0xff] %vm263, %v500
      %505 = vst [vmem:[%s494 + $0x10] sm:$0xff] %v501
      %506 = vst.msk [vmem:[%s494 + $0x18] sm:$0xff] %vm263, %v502
      %s507 = scalar_lea.vmem %s4, 256
      %v508 = vld [vmem:[%s507] sm:$0xff]
      %v509 = vld [vmem:[%s507 + $0x8] sm:$0xff]
      %v510 = vld [vmem:[%s507 + $0x10] sm:$0xff]
      %v511 = vld [vmem:[%s507 + $0x18] sm:$0xff]
      %v512 = vld [vmem:[%s507 + $0x20] sm:$0xff]
      %v513 = vld [vmem:[%s507 + $0x28] sm:$0xff]
      %v514 = vld [vmem:[%s507 + $0x30] sm:$0xff]
      %v515 = vld [vmem:[%s507 + $0x38] sm:$0xff]
      %v516 = vld [vmem:[%s507 + $0x40] sm:$0xff]
      %v517 = vld [vmem:[%s507 + $0x48] sm:$0xff]
      %v518 = vld [vmem:[%s507 + $0x50] sm:$0xff]
      %v519 = vld [vmem:[%s507 + $0x58] sm:$0xff]
      %v520 = vld [vmem:[%s507 + $0x60] sm:$0xff]
      %v521 = vld [vmem:[%s507 + $0x68] sm:$0xff]
      %v522 = vld [vmem:[%s507 + $0x70] sm:$0xff]
      %v523 = vld [vmem:[%s507 + $0x78] sm:$0xff]
      %524 = vmatprep.subr.mxu0 %v509
      %525 = vmatpush1.msra.mxu0 %v508
      %526 = vmatprep.subr.mxu0 %v511
      %527 = vmatpush1.msra.mxu0 %v510
      %528 = vmatprep.subr.mxu0 %v513
      %529 = vmatpush1.msra.mxu0 %v512
      %530 = vmatprep.subr.mxu0 %v515
      %531 = vmatpush1.msra.mxu0 %v514
      %532 = vmatprep.subr.mxu0 %v517
      %533 = vmatpush1.msra.mxu0 %v516
      %534 = vmatprep.subr.mxu0 %v519
      %535 = vmatpush1.msra.mxu0 %v518
      %536 = vmatprep.subr.mxu0 %v521
      %537 = vmatpush1.msra.mxu0 %v520
      %538 = vmatprep.subr.mxu0 %v523
      %539 = vmatpush1.msra.mxu0 %v522
      %540 = vmatprep.subr.mxu0 0.0
      %541 = vmatpush1.msra.mxu0 0.0
      %542 = vmatprep.subr.mxu0 0.0
      %543 = vmatpush1.msra.mxu0 0.0
      %544 = vmatprep.subr.mxu0 0.0
      %545 = vmatpush1.msra.mxu0 0.0
      %546 = vmatprep.subr.mxu0 0.0
      %547 = vmatpush1.msra.mxu0 0.0
      %548 = vmatprep.subr.mxu0 0.0
      %549 = vmatpush1.msra.mxu0 0.0
      %550 = vmatprep.subr.mxu0 0.0
      %551 = vmatpush1.msra.mxu0 0.0
      %552 = vmatprep.subr.mxu0 0.0
      %553 = vmatpush1.msra.mxu0 0.0
      %554 = vmatprep.subr.mxu0 0.0
      %555 = vmatpush1.msra.mxu0 0.0
      %556 = vmatprep.subr.mxu0 0.0
      %557 = vmatpush1.msra.mxu0 0.0
      %558 = vmatprep.subr.mxu0 0.0
      %559 = vmatpush1.msra.mxu0 0.0
      %560 = vmatprep.subr.mxu0 0.0
      %561 = vmatpush1.msra.mxu0 0.0
      %562 = vmatprep.subr.mxu0 0.0
      %563 = vmatpush1.msra.mxu0 0.0
      %564 = vmatprep.subr.mxu0 0.0
      %565 = vmatpush1.msra.mxu0 0.0
      %566 = vmatprep.subr.mxu0 0.0
      %567 = vmatpush1.msra.mxu0 0.0
      %568 = vmatprep.subr.mxu0 0.0
      %569 = vmatpush1.msra.mxu0 0.0
      %570 = vmatprep.subr.mxu0 0.0
      %571 = vmatpush1.msra.mxu0 0.0
      %572 = vmatprep.subr.mxu0 0.0
      %573 = vmatpush1.msra.mxu0 0.0
      %574 = vmatprep.subr.mxu0 0.0
      %575 = vmatpush1.msra.mxu0 0.0
      %576 = vmatprep.subr.mxu0 0.0
      %577 = vmatpush1.msra.mxu0 0.0
      %578 = vmatprep.subr.mxu0 0.0
      %579 = vmatpush1.msra.mxu0 0.0
      %580 = vmatprep.subr.mxu0 0.0
      %581 = vmatpush1.msra.mxu0 0.0
      %582 = vmatprep.subr.mxu0 0.0
      %583 = vmatpush1.msra.mxu0 0.0
      %584 = vmatprep.subr.mxu0 0.0
      %585 = vmatpush1.msra.mxu0 0.0
      %586 = vmatprep.subr.mxu0 0.0
      %587 = vmatpush1.msra.mxu0 0.0
      %588 = vmatprep.mubr.f32.mxu0 0.0
      %589 = vmatmul.mubr.f32.gmra.mrb[0].mxu0 %v306
      %v590 = vpop.f32.mrb[0].mxu0
      %v591 = vadd.f32 0.0, %v590
      %v592 = vpop.f32.mrb[0].mxu0
      %v593 = vadd.f32 0.0, %v592
      %594 = vmatprep.mubr.f32.mxu0 0.0
      %595 = vmatmul.mubr.f32.gmra.mrb[0].mxu0 %v309
      %v596 = vpop.f32.mrb[0].mxu0
      %v597 = vadd.f32 0.0, %v596
      %v598 = vpop.f32.mrb[0].mxu0
      %v599 = vadd.f32 0.0, %v598
      %600 = vdwg.mxu0
      %s601 = scalar_lea.vmem %s226, 96
      %v602 = vld [vmem:[%s601] sm:$0xff]
      %v603 = vld [vmem:[%s601 + $0x8] sm:$0xff]
      %v604 = vld [vmem:[%s601 + $0x10] sm:$0xff]
      %v605 = vld [vmem:[%s601 + $0x18] sm:$0xff]
      %v606 = vadd.f32 %v602, %v591
      %v607 = vadd.f32 %v603, %v593
      %v608 = vadd.f32 %v604, %v597
      %v609 = vadd.f32 %v605, %v599
      %610 = vst [vmem:[%s601] sm:$0xff] %v606
      %611 = vst.msk [vmem:[%s601 + $0x8] sm:$0xff] %vm263, %v607
      %612 = vst [vmem:[%s601 + $0x10] sm:$0xff] %v608
      %613 = vst.msk [vmem:[%s601 + $0x18] sm:$0xff] %vm263, %v609
      %s614 = scalar_lea.vmem %s4, 384
      %v615 = vld [vmem:[%s614] sm:$0xff]
      %v616 = vld [vmem:[%s614 + $0x8] sm:$0xff]
      %v617 = vld [vmem:[%s614 + $0x10] sm:$0xff]
      %v618 = vld [vmem:[%s614 + $0x18] sm:$0xff]
      %v619 = vld [vmem:[%s614 + $0x20] sm:$0xff]
      %v620 = vld [vmem:[%s614 + $0x28] sm:$0xff]
      %v621 = vld [vmem:[%s614 + $0x30] sm:$0xff]
      %v622 = vld [vmem:[%s614 + $0x38] sm:$0xff]
      %v623 = vld [vmem:[%s614 + $0x40] sm:$0xff]
      %v624 = vld [vmem:[%s614 + $0x48] sm:$0xff]
      %v625 = vld [vmem:[%s614 + $0x50] sm:$0xff]
      %v626 = vld [vmem:[%s614 + $0x58] sm:$0xff]
      %v627 = vld [vmem:[%s614 + $0x60] sm:$0xff]
      %v628 = vld [vmem:[%s614 + $0x68] sm:$0xff]
      %v629 = vld [vmem:[%s614 + $0x70] sm:$0xff]
      %v630 = vld [vmem:[%s614 + $0x78] sm:$0xff]
      %631 = vmatprep.subr.mxu0 %v616
      %632 = vmatpush1.msra.mxu0 %v615
      %633 = vmatprep.subr.mxu0 %v618
      %634 = vmatpush1.msra.mxu0 %v617
      %635 = vmatprep.subr.mxu0 %v620
      %636 = vmatpush1.msra.mxu0 %v619
      %637 = vmatprep.subr.mxu0 %v622
      %638 = vmatpush1.msra.mxu0 %v621
      %639 = vmatprep.subr.mxu0 %v624
      %640 = vmatpush1.msra.mxu0 %v623
      %641 = vmatprep.subr.mxu0 %v626
      %642 = vmatpush1.msra.mxu0 %v625
      %643 = vmatprep.subr.mxu0 %v628
      %644 = vmatpush1.msra.mxu0 %v627
      %645 = vmatprep.subr.mxu0 %v630
      %646 = vmatpush1.msra.mxu0 %v629
      %647 = vmatprep.subr.mxu0 0.0
      %648 = vmatpush1.msra.mxu0 0.0
      %649 = vmatprep.subr.mxu0 0.0
      %650 = vmatpush1.msra.mxu0 0.0
      %651 = vmatprep.subr.mxu0 0.0
      %652 = vmatpush1.msra.mxu0 0.0
      %653 = vmatprep.subr.mxu0 0.0
      %654 = vmatpush1.msra.mxu0 0.0
      %655 = vmatprep.subr.mxu0 0.0
      %656 = vmatpush1.msra.mxu0 0.0
      %657 = vmatprep.subr.mxu0 0.0
      %658 = vmatpush1.msra.mxu0 0.0
      %659 = vmatprep.subr.mxu0 0.0
      %660 = vmatpush1.msra.mxu0 0.0
      %661 = vmatprep.subr.mxu0 0.0
      %662 = vmatpush1.msra.mxu0 0.0
      %663 = vmatprep.subr.mxu0 0.0
      %664 = vmatpush1.msra.mxu0 0.0
      %665 = vmatprep.subr.mxu0 0.0
      %666 = vmatpush1.msra.mxu0 0.0
      %667 = vmatprep.subr.mxu0 0.0
      %668 = vmatpush1.msra.mxu0 0.0
      %669 = vmatprep.subr.mxu0 0.0
      %670 = vmatpush1.msra.mxu0 0.0
      %671 = vmatprep.subr.mxu0 0.0
      %672 = vmatpush1.msra.mxu0 0.0
      %673 = vmatprep.subr.mxu0 0.0
      %674 = vmatpush1.msra.mxu0 0.0
      %675 = vmatprep.subr.mxu0 0.0
      %676 = vmatpush1.msra.mxu0 0.0
      %677 = vmatprep.subr.mxu0 0.0
      %678 = vmatpush1.msra.mxu0 0.0
      %679 = vmatprep.subr.mxu0 0.0
      %680 = vmatpush1.msra.mxu0 0.0
      %681 = vmatprep.subr.mxu0 0.0
      %682 = vmatpush1.msra.mxu0 0.0
      %683 = vmatprep.subr.mxu0 0.0
      %684 = vmatpush1.msra.mxu0 0.0
      %685 = vmatprep.subr.mxu0 0.0
      %686 = vmatpush1.msra.mxu0 0.0
      %687 = vmatprep.subr.mxu0 0.0
      %688 = vmatpush1.msra.mxu0 0.0
      %689 = vmatprep.subr.mxu0 0.0
      %690 = vmatpush1.msra.mxu0 0.0
      %691 = vmatprep.subr.mxu0 0.0
      %692 = vmatpush1.msra.mxu0 0.0
      %693 = vmatprep.subr.mxu0 0.0
      %694 = vmatpush1.msra.mxu0 0.0
      %695 = vmatprep.mubr.f32.mxu0 0.0
      %696 = vmatmul.mubr.f32.gmra.mrb[0].mxu0 %v306
      %v697 = vpop.f32.mrb[0].mxu0
      %v698 = vadd.f32 0.0, %v697
      %v699 = vpop.f32.mrb[0].mxu0
      %v700 = vadd.f32 0.0, %v699
      %701 = vmatprep.mubr.f32.mxu0 0.0
      %702 = vmatmul.mubr.f32.gmra.mrb[0].mxu0 %v309
      %v703 = vpop.f32.mrb[0].mxu0
      %v704 = vadd.f32 0.0, %v703
      %v705 = vpop.f32.mrb[0].mxu0
      %v706 = vadd.f32 0.0, %v705
      %707 = vdwg.mxu0
      %s708 = scalar_lea.vmem %s226, 144
      %v709 = vld [vmem:[%s708] sm:$0xff]
      %v710 = vld [vmem:[%s708 + $0x8] sm:$0xff]
      %v711 = vld [vmem:[%s708 + $0x10] sm:$0xff]
      %v712 = vld [vmem:[%s708 + $0x18] sm:$0xff]
      %v713 = vadd.f32 %v709, %v698
      %v714 = vadd.f32 %v710, %v700
      %v715 = vadd.f32 %v711, %v704
      %v716 = vadd.f32 %v712, %v706
      %717 = vst [vmem:[%s708] sm:$0xff] %v713
      %718 = vst.msk [vmem:[%s708 + $0x8] sm:$0xff] %vm263, %v714
      %719 = vst [vmem:[%s708 + $0x10] sm:$0xff] %v715
      %720 = vst.msk [vmem:[%s708 + $0x18] sm:$0xff] %vm263, %v716
      %s721 = scalar_lea.vmem %s4, 512
      %v722 = vld [vmem:[%s721] sm:$0xff]
      %v723 = vld [vmem:[%s721 + $0x8] sm:$0xff]
      %v724 = vld [vmem:[%s721 + $0x10] sm:$0xff]
      %v725 = vld [vmem:[%s721 + $0x18] sm:$0xff]
      %v726 = vld [vmem:[%s721 + $0x20] sm:$0xff]
      %v727 = vld [vmem:[%s721 + $0x28] sm:$0xff]
      %v728 = vld [vmem:[%s721 + $0x30] sm:$0xff]
      %v729 = vld [vmem:[%s721 + $0x38] sm:$0xff]
      %v730 = vld [vmem:[%s721 + $0x40] sm:$0xff]
      %v731 = vld [vmem:[%s721 + $0x48] sm:$0xff]
      %v732 = vld [vmem:[%s721 + $0x50] sm:$0xff]
      %v733 = vld [vmem:[%s721 + $0x58] sm:$0xff]
      %v734 = vld [vmem:[%s721 + $0x60] sm:$0xff]
      %v735 = vld [vmem:[%s721 + $0x68] sm:$0xff]
      %v736 = vld [vmem:[%s721 + $0x70] sm:$0xff]
      %v737 = vld [vmem:[%s721 + $0x78] sm:$0xff]
      %738 = vmatprep.subr.mxu0 %v723
      %739 = vmatpush1.msra.mxu0 %v722
      %740 = vmatprep.subr.mxu0 %v725
      %741 = vmatpush1.msra.mxu0 %v724
      %742 = vmatprep.subr.mxu0 %v727
      %743 = vmatpush1.msra.mxu0 %v726
      %744 = vmatprep.subr.mxu0 %v729
      %745 = vmatpush1.msra.mxu0 %v728
      %746 = vmatprep.subr.mxu0 %v731
      %747 = vmatpush1.msra.mxu0 %v730
      %748 = vmatprep.subr.mxu0 %v733
      %749 = vmatpush1.msra.mxu0 %v732
      %750 = vmatprep.subr.mxu0 %v735
      %751 = vmatpush1.msra.mxu0 %v734
      %752 = vmatprep.subr.mxu0 %v737
      %753 = vmatpush1.msra.mxu0 %v736
      %754 = vmatprep.subr.mxu0 0.0
      %755 = vmatpush1.msra.mxu0 0.0
      %756 = vmatprep.subr.mxu0 0.0
      %757 = vmatpush1.msra.mxu0 0.0
      %758 = vmatprep.subr.mxu0 0.0
      %759 = vmatpush1.msra.mxu0 0.0
      %760 = vmatprep.subr.mxu0 0.0
      %761 = vmatpush1.msra.mxu0 0.0
      %762 = vmatprep.subr.mxu0 0.0
      %763 = vmatpush1.msra.mxu0 0.0
      %764 = vmatprep.subr.mxu0 0.0
      %765 = vmatpush1.msra.mxu0 0.0
      %766 = vmatprep.subr.mxu0 0.0
      %767 = vmatpush1.msra.mxu0 0.0
      %768 = vmatprep.subr.mxu0 0.0
      %769 = vmatpush1.msra.mxu0 0.0
      %770 = vmatprep.subr.mxu0 0.0
      %771 = vmatpush1.msra.mxu0 0.0
      %772 = vmatprep.subr.mxu0 0.0
      %773 = vmatpush1.msra.mxu0 0.0
      %774 = vmatprep.subr.mxu0 0.0
      %775 = vmatpush1.msra.mxu0 0.0
      %776 = vmatprep.subr.mxu0 0.0
      %777 = vmatpush1.msra.mxu0 0.0
      %778 = vmatprep.subr.mxu0 0.0
      %779 = vmatpush1.msra.mxu0 0.0
      %780 = vmatprep.subr.mxu0 0.0
      %781 = vmatpush1.msra.mxu0 0.0
      %782 = vmatprep.subr.mxu0 0.0
      %783 = vmatpush1.msra.mxu0 0.0
      %784 = vmatprep.subr.mxu0 0.0
      %785 = vmatpush1.msra.mxu0 0.0
      %786 = vmatprep.subr.mxu0 0.0
      %787 = vmatpush1.msra.mxu0 0.0
      %788 = vmatprep.subr.mxu0 0.0
      %789 = vmatpush1.msra.mxu0 0.0
      %790 = vmatprep.subr.mxu0 0.0
      %791 = vmatpush1.msra.mxu0 0.0
      %792 = vmatprep.subr.mxu0 0.0
      %793 = vmatpush1.msra.mxu0 0.0
      %794 = vmatprep.subr.mxu0 0.0
      %795 = vmatpush1.msra.mxu0 0.0
      %796 = vmatprep.subr.mxu0 0.0
      %797 = vmatpush1.msra.mxu0 0.0
      %798 = vmatprep.subr.mxu0 0.0
      %799 = vmatpush1.msra.mxu0 0.0
      %800 = vmatprep.subr.mxu0 0.0
      %801 = vmatpush1.msra.mxu0 0.0
      %802 = vmatprep.mubr.f32.mxu0 0.0
      %803 = vmatmul.mubr.f32.gmra.mrb[0].mxu0 %v306
      %v804 = vpop.f32.mrb[0].mxu0
      %v805 = vadd.f32 0.0, %v804
      %v806 = vpop.f32.mrb[0].mxu0
      %v807 = vadd.f32 0.0, %v806
      %808 = vmatprep.mubr.f32.mxu0 0.0
      %809 = vmatmul.mubr.f32.gmra.mrb[0].mxu0 %v309
      %v810 = vpop.f32.mrb[0].mxu0
      %v811 = vadd.f32 0.0, %v810
      %v812 = vpop.f32.mrb[0].mxu0
      %v813 = vadd.f32 0.0, %v812
      %814 = vdwg.mxu0
      %v815 = vld [vmem:[%s226] sm:$0xfe]
      %v816 = vld [vmem:[%s226 + $0x8] sm:$0xfe]
      %v817 = vld [vmem:[%s226 + $0x10] sm:$0xff]
      %v818 = vld [vmem:[%s226 + $0x18] sm:$0xff]
      %v819 = vld [vmem:[%s226 + $0x20] sm:$0x1]
      %v820 = vld [vmem:[%s226 + $0x28] sm:$0x1]
      %vm825 = vcmask 1040384
      %v826 = vrot.slane %v805, 7
      %v827 = vrot.slane %v807, 7
      %v828 = vrot.slane %v811, 7
      %v829 = vsel %vm825, %v826, %v828
      %v830 = vrot.slane %v813, 7
      %v831 = vsel %vm825, %v827, %v830
      %v838 = vadd.f32 %v815, %v826
      %v839 = vadd.f32 %v816, %v827
      %v840 = vadd.f32 %v817, %v829
      %v841 = vadd.f32 %v818, %v831
      %v842 = vadd.f32 %v819, %v828
      %v843 = vadd.f32 %v820, %v830
      %844 = vst [vmem:[%s226] sm:$0xfe] %v838
      %vm845 = vcmask 64513
      %846 = vst.msk [vmem:[%s226 + $0x8] sm:$0xfe] %vm845, %v839
      %847 = vst [vmem:[%s226 + $0x10] sm:$0xff] %v840
      %848 = vst.msk [vmem:[%s226 + $0x18] sm:$0xff] %vm263, %v841
      %849 = vst [vmem:[%s226 + $0x20] sm:$0x1] %v842
      %850 = vst.msk [vmem:[%s226 + $0x28] sm:$0x1] %vm268, %v843
      %s851 = scalar_lea.vmem %s4, 640
      %v852 = vld [vmem:[%s851] sm:$0xff]
      %v853 = vld [vmem:[%s851 + $0x8] sm:$0xff]
      %v854 = vld [vmem:[%s851 + $0x10] sm:$0xff]
      %v855 = vld [vmem:[%s851 + $0x18] sm:$0xff]
      %v856 = vld [vmem:[%s851 + $0x20] sm:$0xff]
      %v857 = vld [vmem:[%s851 + $0x28] sm:$0xff]
      %v858 = vld [vmem:[%s851 + $0x30] sm:$0xff]
      %v859 = vld [vmem:[%s851 + $0x38] sm:$0xff]
      %v860 = vld [vmem:[%s851 + $0x40] sm:$0xff]
      %v861 = vld [vmem:[%s851 + $0x48] sm:$0xff]
      %v862 = vld [vmem:[%s851 + $0x50] sm:$0xff]
      %v863 = vld [vmem:[%s851 + $0x58] sm:$0xff]
      %v864 = vld [vmem:[%s851 + $0x60] sm:$0xff]
      %v865 = vld [vmem:[%s851 + $0x68] sm:$0xff]
      %v866 = vld [vmem:[%s851 + $0x70] sm:$0xff]
      %v867 = vld [vmem:[%s851 + $0x78] sm:$0xff]
      %868 = vmatprep.subr.mxu0 %v853
      %869 = vmatpush1.msra.mxu0 %v852
      %870 = vmatprep.subr.mxu0 %v855
      %871 = vmatpush1.msra.mxu0 %v854
      %872 = vmatprep.subr.mxu0 %v857
      %873 = vmatpush1.msra.mxu0 %v856
      %874 = vmatprep.subr.mxu0 %v859
      %875 = vmatpush1.msra.mxu0 %v858
      %876 = vmatprep.subr.mxu0 %v861
      %877 = vmatpush1.msra.mxu0 %v860
      %878 = vmatprep.subr.mxu0 %v863
      %879 = vmatpush1.msra.mxu0 %v862
      %880 = vmatprep.subr.mxu0 %v865
      %881 = vmatpush1.msra.mxu0 %v864
      %882 = vmatprep.subr.mxu0 %v867
      %883 = vmatpush1.msra.mxu0 %v866
      %884 = vmatprep.subr.mxu0 0.0
      %885 = vmatpush1.msra.mxu0 0.0
      %886 = vmatprep.subr.mxu0 0.0
      %887 = vmatpush1.msra.mxu0 0.0
      %888 = vmatprep.subr.mxu0 0.0
      %889 = vmatpush1.msra.mxu0 0.0
      %890 = vmatprep.subr.mxu0 0.0
      %891 = vmatpush1.msra.mxu0 0.0
      %892 = vmatprep.subr.mxu0 0.0
      %893 = vmatpush1.msra.mxu0 0.0
      %894 = vmatprep.subr.mxu0 0.0
      %895 = vmatpush1.msra.mxu0 0.0
      %896 = vmatprep.subr.mxu0 0.0
      %897 = vmatpush1.msra.mxu0 0.0
      %898 = vmatprep.subr.mxu0 0.0
      %899 = vmatpush1.msra.mxu0 0.0
      %900 = vmatprep.subr.mxu0 0.0
      %901 = vmatpush1.msra.mxu0 0.0
      %902 = vmatprep.subr.mxu0 0.0
      %903 = vmatpush1.msra.mxu0 0.0
      %904 = vmatprep.subr.mxu0 0.0
      %905 = vmatpush1.msra.mxu0 0.0
      %906 = vmatprep.subr.mxu0 0.0
      %907 = vmatpush1.msra.mxu0 0.0
      %908 = vmatprep.subr.mxu0 0.0
      %909 = vmatpush1.msra.mxu0 0.0
      %910 = vmatprep.subr.mxu0 0.0
      %911 = vmatpush1.msra.mxu0 0.0
      %912 = vmatprep.subr.mxu0 0.0
      %913 = vmatpush1.msra.mxu0 0.0
      %914 = vmatprep.subr.mxu0 0.0
      %915 = vmatpush1.msra.mxu0 0.0
      %916 = vmatprep.subr.mxu0 0.0
      %917 = vmatpush1.msra.mxu0 0.0
      %918 = vmatprep.subr.mxu0 0.0
      %919 = vmatpush1.msra.mxu0 0.0
      %920 = vmatprep.subr.mxu0 0.0
      %921 = vmatpush1.msra.mxu0 0.0
      %922 = vmatprep.subr.mxu0 0.0
      %923 = vmatpush1.msra.mxu0 0.0
      %924 = vmatprep.subr.mxu0 0.0
      %925 = vmatpush1.msra.mxu0 0.0
      %926 = vmatprep.subr.mxu0 0.0
      %927 = vmatpush1.msra.mxu0 0.0
      %928 = vmatprep.subr.mxu0 0.0
      %929 = vmatpush1.msra.mxu0 0.0
      %930 = vmatprep.subr.mxu0 0.0
      %931 = vmatpush1.msra.mxu0 0.0
      %932 = vmatprep.mubr.f32.mxu0 0.0
      %933 = vmatmul.mubr.f32.gmra.mrb[0].mxu0 %v306
      %v934 = vpop.f32.mrb[0].mxu0
      %v935 = vadd.f32 0.0, %v934
      %v936 = vpop.f32.mrb[0].mxu0
      %v937 = vadd.f32 0.0, %v936
      %938 = vmatprep.mubr.f32.mxu0 0.0
      %939 = vmatmul.mubr.f32.gmra.mrb[0].mxu0 %v309
      %v940 = vpop.f32.mrb[0].mxu0
      %v941 = vadd.f32 0.0, %v940
      %v942 = vpop.f32.mrb[0].mxu0
      %v943 = vadd.f32 0.0, %v942
      %944 = vdwg.mxu0
      %v945 = vld [vmem:[%s494] sm:$0xfe]
      %v946 = vld [vmem:[%s494 + $0x8] sm:$0xfe]
      %v947 = vld [vmem:[%s494 + $0x10] sm:$0xff]
      %v948 = vld [vmem:[%s494 + $0x18] sm:$0xff]
      %v949 = vld [vmem:[%s494 + $0x20] sm:$0x1]
      %v950 = vld [vmem:[%s494 + $0x28] sm:$0x1]
      %v955 = vrot.slane %v935, 7
      %v956 = vrot.slane %v937, 7
      %v957 = vrot.slane %v941, 7
      %v958 = vsel %vm825, %v955, %v957
      %v959 = vrot.slane %v943, 7
      %v960 = vsel %vm825, %v956, %v959
      %v967 = vadd.f32 %v945, %v955
      %v968 = vadd.f32 %v946, %v956
      %v969 = vadd.f32 %v947, %v958
      %v970 = vadd.f32 %v948, %v960
      %v971 = vadd.f32 %v949, %v957
      %v972 = vadd.f32 %v950, %v959
      %973 = vst [vmem:[%s494] sm:$0xfe] %v967
      %974 = vst.msk [vmem:[%s494 + $0x8] sm:$0xfe] %vm845, %v968
      %975 = vst [vmem:[%s494 + $0x10] sm:$0xff] %v969
      %976 = vst.msk [vmem:[%s494 + $0x18] sm:$0xff] %vm263, %v970
      %977 = vst [vmem:[%s494 + $0x20] sm:$0x1] %v971
      %978 = vst.msk [vmem:[%s494 + $0x28] sm:$0x1] %vm268, %v972
      %s979 = scalar_lea.vmem %s4, 768
      %v980 = vld [vmem:[%s979] sm:$0xff]
      %v981 = vld [vmem:[%s979 + $0x8] sm:$0xff]
      %v982 = vld [vmem:[%s979 + $0x10] sm:$0xff]
      %v983 = vld [vmem:[%s979 + $0x18] sm:$0xff]
      %v984 = vld [vmem:[%s979 + $0x20] sm:$0xff]
      %v985 = vld [vmem:[%s979 + $0x28] sm:$0xff]
      %v986 = vld [vmem:[%s979 + $0x30] sm:$0xff]
      %v987 = vld [vmem:[%s979 + $0x38] sm:$0xff]
      %v988 = vld [vmem:[%s979 + $0x40] sm:$0xff]
      %v989 = vld [vmem:[%s979 + $0x48] sm:$0xff]
      %v990 = vld [vmem:[%s979 + $0x50] sm:$0xff]
      %v991 = vld [vmem:[%s979 + $0x58] sm:$0xff]
      %v992 = vld [vmem:[%s979 + $0x60] sm:$0xff]
      %v993 = vld [vmem:[%s979 + $0x68] sm:$0xff]
      %v994 = vld [vmem:[%s979 + $0x70] sm:$0xff]
      %v995 = vld [vmem:[%s979 + $0x78] sm:$0xff]
      %996 = vmatprep.subr.mxu0 %v981
      %997 = vmatpush1.msra.mxu0 %v980
      %998 = vmatprep.subr.mxu0 %v983
      %999 = vmatpush1.msra.mxu0 %v982
      %1000 = vmatprep.subr.mxu0 %v985
      %1001 = vmatpush1.msra.mxu0 %v984
      %1002 = vmatprep.subr.mxu0 %v987
      %1003 = vmatpush1.msra.mxu0 %v986
      %1004 = vmatprep.subr.mxu0 %v989
      %1005 = vmatpush1.msra.mxu0 %v988
      %1006 = vmatprep.subr.mxu0 %v991
      %1007 = vmatpush1.msra.mxu0 %v990
      %1008 = vmatprep.subr.mxu0 %v993
      %1009 = vmatpush1.msra.mxu0 %v992
      %1010 = vmatprep.subr.mxu0 %v995
      %1011 = vmatpush1.msra.mxu0 %v994
      %1012 = vmatprep.subr.mxu0 0.0
      %1013 = vmatpush1.msra.mxu0 0.0
      %1014 = vmatprep.subr.mxu0 0.0
      %1015 = vmatpush1.msra.mxu0 0.0
      %1016 = vmatprep.subr.mxu0 0.0
      %1017 = vmatpush1.msra.mxu0 0.0
      %1018 = vmatprep.subr.mxu0 0.0
      %1019 = vmatpush1.msra.mxu0 0.0
      %1020 = vmatprep.subr.mxu0 0.0
      %1021 = vmatpush1.msra.mxu0 0.0
      %1022 = vmatprep.subr.mxu0 0.0
      %1023 = vmatpush1.msra.mxu0 0.0
      %1024 = vmatprep.subr.mxu0 0.0
      %1025 = vmatpush1.msra.mxu0 0.0
      %1026 = vmatprep.subr.mxu0 0.0
      %1027 = vmatpush1.msra.mxu0 0.0
      %1028 = vmatprep.subr.mxu0 0.0
      %1029 = vmatpush1.msra.mxu0 0.0
      %1030 = vmatprep.subr.mxu0 0.0
      %1031 = vmatpush1.msra.mxu0 0.0
      %1032 = vmatprep.subr.mxu0 0.0
      %1033 = vmatpush1.msra.mxu0 0.0
      %1034 = vmatprep.subr.mxu0 0.0
      %1035 = vmatpush1.msra.mxu0 0.0
      %1036 = vmatprep.subr.mxu0 0.0
      %1037 = vmatpush1.msra.mxu0 0.0
      %1038 = vmatprep.subr.mxu0 0.0
      %1039 = vmatpush1.msra.mxu0 0.0
      %1040 = vmatprep.subr.mxu0 0.0
      %1041 = vmatpush1.msra.mxu0 0.0
      %1042 = vmatprep.subr.mxu0 0.0
      %1043 = vmatpush1.msra.mxu0 0.0
      %1044 = vmatprep.subr.mxu0 0.0
      %1045 = vmatpush1.msra.mxu0 0.0
      %1046 = vmatprep.subr.mxu0 0.0
      %1047 = vmatpush1.msra.mxu0 0.0
      %1048 = vmatprep.subr.mxu0 0.0
      %1049 = vmatpush1.msra.mxu0 0.0
      %1050 = vmatprep.subr.mxu0 0.0
      %1051 = vmatpush1.msra.mxu0 0.0
      %1052 = vmatprep.subr.mxu0 0.0
      %1053 = vmatpush1.msra.mxu0 0.0
      %1054 = vmatprep.subr.mxu0 0.0
      %1055 = vmatpush1.msra.mxu0 0.0
      %1056 = vmatprep.subr.mxu0 0.0
      %1057 = vmatpush1.msra.mxu0 0.0
      %1058 = vmatprep.subr.mxu0 0.0
      %1059 = vmatpush1.msra.mxu0 0.0
      %1060 = vmatprep.mubr.f32.mxu0 0.0
      %1061 = vmatmul.mubr.f32.gmra.mrb[0].mxu0 %v306
      %v1062 = vpop.f32.mrb[0].mxu0
      %v1063 = vadd.f32 0.0, %v1062
      %v1064 = vpop.f32.mrb[0].mxu0
      %v1065 = vadd.f32 0.0, %v1064
      %1066 = vmatprep.mubr.f32.mxu0 0.0
      %1067 = vmatmul.mubr.f32.gmra.mrb[0].mxu0 %v309
      %v1068 = vpop.f32.mrb[0].mxu0
      %v1069 = vadd.f32 0.0, %v1068
      %v1070 = vpop.f32.mrb[0].mxu0
      %v1071 = vadd.f32 0.0, %v1070
      %1072 = vdwg.mxu0
      %v1073 = vld [vmem:[%s601] sm:$0xfe]
      %v1074 = vld [vmem:[%s601 + $0x8] sm:$0xfe]
      %v1075 = vld [vmem:[%s601 + $0x10] sm:$0xff]
      %v1076 = vld [vmem:[%s601 + $0x18] sm:$0xff]
      %v1077 = vld [vmem:[%s601 + $0x20] sm:$0x1]
      %v1078 = vld [vmem:[%s601 + $0x28] sm:$0x1]
      %v1083 = vrot.slane %v1063, 7
      %v1084 = vrot.slane %v1065, 7
      %v1085 = vrot.slane %v1069, 7
      %v1086 = vsel %vm825, %v1083, %v1085
      %v1087 = vrot.slane %v1071, 7
      %v1088 = vsel %vm825, %v1084, %v1087
      %v1095 = vadd.f32 %v1073, %v1083
      %v1096 = vadd.f32 %v1074, %v1084
      %v1097 = vadd.f32 %v1075, %v1086
      %v1098 = vadd.f32 %v1076, %v1088
      %v1099 = vadd.f32 %v1077, %v1085
      %v1100 = vadd.f32 %v1078, %v1087
      %1101 = vst [vmem:[%s601] sm:$0xfe] %v1095
      %1102 = vst.msk [vmem:[%s601 + $0x8] sm:$0xfe] %vm845, %v1096
      %1103 = vst [vmem:[%s601 + $0x10] sm:$0xff] %v1097
      %1104 = vst.msk [vmem:[%s601 + $0x18] sm:$0xff] %vm263, %v1098
      %1105 = vst [vmem:[%s601 + $0x20] sm:$0x1] %v1099
      %1106 = vst.msk [vmem:[%s601 + $0x28] sm:$0x1] %vm268, %v1100
      %s1107 = scalar_lea.vmem %s4, 896
      %v1108 = vld [vmem:[%s1107] sm:$0xff]
      %v1109 = vld [vmem:[%s1107 + $0x8] sm:$0xff]
      %v1110 = vld [vmem:[%s1107 + $0x10] sm:$0xff]
      %v1111 = vld [vmem:[%s1107 + $0x18] sm:$0xff]
      %v1112 = vld [vmem:[%s1107 + $0x20] sm:$0xff]
      %v1113 = vld [vmem:[%s1107 + $0x28] sm:$0xff]
      %v1114 = vld [vmem:[%s1107 + $0x30] sm:$0xff]
      %v1115 = vld [vmem:[%s1107 + $0x38] sm:$0xff]
      %v1116 = vld [vmem:[%s1107 + $0x40] sm:$0xff]
      %v1117 = vld [vmem:[%s1107 + $0x48] sm:$0xff]
      %v1118 = vld [vmem:[%s1107 + $0x50] sm:$0xff]
      %v1119 = vld [vmem:[%s1107 + $0x58] sm:$0xff]
      %v1120 = vld [vmem:[%s1107 + $0x60] sm:$0xff]
      %v1121 = vld [vmem:[%s1107 + $0x68] sm:$0xff]
      %v1122 = vld [vmem:[%s1107 + $0x70] sm:$0xff]
      %v1123 = vld [vmem:[%s1107 + $0x78] sm:$0xff]
      %1124 = vmatprep.subr.mxu0 %v1109
      %1125 = vmatpush1.msra.mxu0 %v1108
      %1126 = vmatprep.subr.mxu0 %v1111
      %1127 = vmatpush1.msra.mxu0 %v1110
      %1128 = vmatprep.subr.mxu0 %v1113
      %1129 = vmatpush1.msra.mxu0 %v1112
      %1130 = vmatprep.subr.mxu0 %v1115
      %1131 = vmatpush1.msra.mxu0 %v1114
      %1132 = vmatprep.subr.mxu0 %v1117
      %1133 = vmatpush1.msra.mxu0 %v1116
      %1134 = vmatprep.subr.mxu0 %v1119
      %1135 = vmatpush1.msra.mxu0 %v1118
      %1136 = vmatprep.subr.mxu0 %v1121
      %1137 = vmatpush1.msra.mxu0 %v1120
      %1138 = vmatprep.subr.mxu0 %v1123
      %1139 = vmatpush1.msra.mxu0 %v1122
      %1140 = vmatprep.subr.mxu0 0.0
      %1141 = vmatpush1.msra.mxu0 0.0
      %1142 = vmatprep.subr.mxu0 0.0
      %1143 = vmatpush1.msra.mxu0 0.0
      %1144 = vmatprep.subr.mxu0 0.0
      %1145 = vmatpush1.msra.mxu0 0.0
      %1146 = vmatprep.subr.mxu0 0.0
      %1147 = vmatpush1.msra.mxu0 0.0
      %1148 = vmatprep.subr.mxu0 0.0
      %1149 = vmatpush1.msra.mxu0 0.0
      %1150 = vmatprep.subr.mxu0 0.0
      %1151 = vmatpush1.msra.mxu0 0.0
      %1152 = vmatprep.subr.mxu0 0.0
      %1153 = vmatpush1.msra.mxu0 0.0
      %1154 = vmatprep.subr.mxu0 0.0
      %1155 = vmatpush1.msra.mxu0 0.0
      %1156 = vmatprep.subr.mxu0 0.0
      %1157 = vmatpush1.msra.mxu0 0.0
      %1158 = vmatprep.subr.mxu0 0.0
      %1159 = vmatpush1.msra.mxu0 0.0
      %1160 = vmatprep.subr.mxu0 0.0
      %1161 = vmatpush1.msra.mxu0 0.0
      %1162 = vmatprep.subr.mxu0 0.0
      %1163 = vmatpush1.msra.mxu0 0.0
      %1164 = vmatprep.subr.mxu0 0.0
      %1165 = vmatpush1.msra.mxu0 0.0
      %1166 = vmatprep.subr.mxu0 0.0
      %1167 = vmatpush1.msra.mxu0 0.0
      %1168 = vmatprep.subr.mxu0 0.0
      %1169 = vmatpush1.msra.mxu0 0.0
      %1170 = vmatprep.subr.mxu0 0.0
      %1171 = vmatpush1.msra.mxu0 0.0
      %1172 = vmatprep.subr.mxu0 0.0
      %1173 = vmatpush1.msra.mxu0 0.0
      %1174 = vmatprep.subr.mxu0 0.0
      %1175 = vmatpush1.msra.mxu0 0.0
      %1176 = vmatprep.subr.mxu0 0.0
      %1177 = vmatpush1.msra.mxu0 0.0
      %1178 = vmatprep.subr.mxu0 0.0
      %1179 = vmatpush1.msra.mxu0 0.0
      %1180 = vmatprep.subr.mxu0 0.0
      %1181 = vmatpush1.msra.mxu0 0.0
      %1182 = vmatprep.subr.mxu0 0.0
      %1183 = vmatpush1.msra.mxu0 0.0
      %1184 = vmatprep.subr.mxu0 0.0
      %1185 = vmatpush1.msra.mxu0 0.0
      %1186 = vmatprep.subr.mxu0 0.0
      %1187 = vmatpush1.msra.mxu0 0.0
      %1188 = vmatprep.mubr.f32.mxu0 0.0
      %1189 = vmatmul.mubr.f32.gmra.mrb[0].mxu0 %v306
      %v1190 = vpop.f32.mrb[0].mxu0
      %v1191 = vadd.f32 0.0, %v1190
      %v1192 = vpop.f32.mrb[0].mxu0
      %v1193 = vadd.f32 0.0, %v1192
      %1194 = vmatprep.mubr.f32.mxu0 0.0
      %1195 = vmatmul.mubr.f32.gmra.mrb[0].mxu0 %v309
      %v1196 = vpop.f32.mrb[0].mxu0
      %v1197 = vadd.f32 0.0, %v1196
      %v1198 = vpop.f32.mrb[0].mxu0
      %v1199 = vadd.f32 0.0, %v1198
      %1200 = vdwg.mxu0
      %v1201 = vld [vmem:[%s708] sm:$0xfe]
      %v1202 = vld [vmem:[%s708 + $0x8] sm:$0xfe]
      %v1203 = vld [vmem:[%s708 + $0x10] sm:$0xff]
      %v1204 = vld [vmem:[%s708 + $0x18] sm:$0xff]
      %v1205 = vld [vmem:[%s708 + $0x20] sm:$0x1]
      %v1206 = vld [vmem:[%s708 + $0x28] sm:$0x1]
      %v1211 = vrot.slane %v1191, 7
      %v1212 = vrot.slane %v1193, 7
      %v1213 = vrot.slane %v1197, 7
      %v1214 = vsel %vm825, %v1211, %v1213
      %v1215 = vrot.slane %v1199, 7
      %v1216 = vsel %vm825, %v1212, %v1215
      %v1223 = vadd.f32 %v1201, %v1211
      %v1224 = vadd.f32 %v1202, %v1212
      %v1225 = vadd.f32 %v1203, %v1214
      %v1226 = vadd.f32 %v1204, %v1216
      %v1227 = vadd.f32 %v1205, %v1213
      %v1228 = vadd.f32 %v1206, %v1215
      %1229 = vst [vmem:[%s708] sm:$0xfe] %v1223
      %1230 = vst.msk [vmem:[%s708 + $0x8] sm:$0xfe] %vm845, %v1224
      %1231 = vst [vmem:[%s708 + $0x10] sm:$0xff] %v1225
      %1232 = vst.msk [vmem:[%s708 + $0x18] sm:$0xff] %vm263, %v1226
      %1233 = vst [vmem:[%s708 + $0x20] sm:$0x1] %v1227
      %1234 = vst.msk [vmem:[%s708 + $0x28] sm:$0x1] %vm268, %v1228
      %s1235 = smul.u32 4, %s16
      %p1236 = scmp.lt.s32.totalorder %s1235, 7
      %s1237 = scalar_select %p1236, %s1235, 7
      %s1238 = smul.addr %s1237, 6
      %s1239 = smul.addr %s1238, 8
      %s1240 = scalar_lea.vmem %s5, %s1239
      // Predicated region
      $region41: #{deconv_forward.3} parent=39 // pred_check
        %p1241 = pneg %p144
      $region42: #{deconv_forward.3} parent=39 // pred_check_branch
        %1243 = sbr.rel (%p1241) target = $region44
      $region43: #{deconv_forward.3} parent=39 // pred_region
        %s1244 = smul.u32 4, %s16
      $region44: #{deconv_forward.3} parent=39 // pred_fallthru
        _
    $region40: #{deconv_forward.3} parent=5 // pred_fallthru
      _
    %p1245 = scmp.le.s32.totalorder 2, %s11
    // Predicated region
    $region45: #{deconv_forward.3} parent=5 // pred_check
      %p1246 = pneg %p1245
    $region46: #{deconv_forward.3} parent=5 // pred_check_branch
      %1248 = sbr.rel (%p1246) target = $region48
    $region47: #{deconv_forward.3} parent=5 // pred_region
      %s1249 = ssub.s32 %s11, 2
      // Predicated region
      $region49: #{deconv_forward.3} parent=47 // pred_check
        %p1250 = pneg %p150
      $region50: #{deconv_forward.3} parent=47 // pred_check_branch
        %1252 = sbr.rel (%p1250) target = $region52
      $region51: #{deconv_forward.3} parent=47 // pred_region
        %s1253 = smul.u32 4, %s17
        %p1254 = scmp.lt.s32.totalorder %s1253, 7
        %s1255 = scalar_select %p1254, %s1253, 7
        %s1256 = smul.addr %s1255, 6
        %s1257 = smul.addr %s1256, 8
        %s1258 = scalar_lea.vmem %s5, %s1257
      $region52: #{deconv_forward.3} parent=47 // pred_fallthru
        _
    $region48: #{deconv_forward.3} parent=5 // pred_fallthru
      _
  $region6: #{deconv_forward.3} parent=0 // loop_footer
    %s15 = sadd.s32 1, %s11
  $region7: #{deconv_forward.3} parent=0 // loop_footer_branch
    %10 = sbr.rel target = $region3
  $region8: #{deconv_forward.3} parent=0 // loop_exit
    _

</llo_original>
